<compile_context>
chip_gen: v7x
topology: tpu7x:2x2x1
jax: 0.10.0
libtpu: 0.0.40
codegen_flags: <defaults>
</compile_context>

<pallas_src>
import functools

import jax
import jax.numpy as jnp
from jax import lax
from jax.experimental import pallas as pl
from jax.experimental.pallas import tpu as pltpu

_EPS = 1e-5


def _round_up(v, m):
    return -(-v // m) * m


def _vmem_limit_bytes():
    # v5e/v6e: ~96 MiB of the 128 MiB physical; v7x: ~48 MiB of 64 MiB.
    try:
        cap = getattr(pltpu.get_tpu_info(), "vmem_capacity_bytes", None)
        if cap:
            return int(min(cap * 3 // 4, 96 * 1024 * 1024))
    except Exception:
        pass
    return 32 * 1024 * 1024  # conservative fallback, plenty for small graphs


# ----------------------------- kernel helpers ---------------------------------


def _leaky(h, slope):
    return jnp.where(h >= 0, h, slope * h)


def _moments(a):
    # per-feature [sum ; sum of squares] over rows -> (2, K)
    return jnp.concatenate([jnp.sum(a, axis=0, keepdims=True),
                            jnp.sum(a * a, axis=0, keepdims=True)], axis=0)


def _fold(m, inv_count, gamma, beta, w, bias, cdtype):
    """Training-mode BatchNorm folded into the following Linear layer.

    BN(h) @ W + bias == (h * s) @ W + b_eff with
      s = gamma * rsqrt(var + eps),  b_eff = bias + (beta - mu*s) @ W,
    using globally accumulated moments m = [sum; sumsq] (single-pass variance).
    """
    mu = m[0:1, :] * inv_count
    var = jnp.maximum(m[1:2, :] * inv_count - mu * mu, 0.0)
    s = gamma * lax.rsqrt(var + _EPS)
    b = bias + jnp.dot((beta - mu * s).astype(cdtype), w,
                       preferred_element_type=jnp.float32)
    return s, b


# --------------------------------- kernels -------------------------------------


def _edge_kernel(n_edges, fin1, fp, node_out, leakiness, cdtype,
                 x_ref, ea_ref, row_ref, col_ref, m1_ref, w_ref, vin_ref,
                 vout_ref, ssum_ref, m3_ref,
                 m2_ref, s1_ref, b1_ref, s2_ref, b2_ref):
    # grid = (2 phases, edge tiles).
    #   phase 0: gather + layer 1, accumulate BN2 moments
    #   phase 1: layers 1-2, BN3 moments, scatter-sum (+ counts in spare lane)
    p = pl.program_id(0)
    e = pl.program_id(1)
    inv_e = 1.0 / n_edges
    t_e = ea_ref.shape[0]
    n_pad = x_ref.shape[0]

    @pl.when(jnp.logical_and(p == 0, e == 0))
    def _init():
        ssum_ref[...] = jnp.zeros_like(ssum_ref)
        m3_ref[...] = jnp.zeros_like(m3_ref)
        m2_ref[...] = jnp.zeros_like(m2_ref)
        # BN1 fold (m1 arrives complete from the wrapper) - hoisted once.
        s, b = _fold(m1_ref[...], inv_e, vin_ref[0:1, :], vin_ref[1:2, :],
                     w_ref[0:fin1, :], vout_ref[4:5, :], cdtype)
        s1_ref[...] = s
        b1_ref[...] = b

    @pl.when(jnp.logical_and(p == 1, e == 0))
    def _fold_layer2():
        # BN2 fold from the moments accumulated during phase 0 - hoisted once.
        s, b = _fold(m2_ref[...], inv_e, vout_ref[0:1, :], vout_ref[1:2, :],
                     w_ref[fin1:fin1 + fp, :], vout_ref[5:6, :], cdtype)
        s2_ref[...] = s
        b2_ref[...] = b

    # x[row] gather as a one-hot matmul (one-hots are exact in bf16).
    row = row_ref[...]                                    # (t_e, 1) int32
    gmat = (lax.broadcasted_iota(jnp.int32, (t_e, n_pad), 1) == row).astype(cdtype)
    x_row = jnp.dot(gmat, x_ref[...].astype(cdtype),
                    preferred_element_type=jnp.float32)
    cat = jnp.concatenate([x_row, ea_ref[...]], axis=1)   # (t_e, fin1)

    # rows past the real edge count are padding -> excluded from moments
    valid = (e * t_e + lax.broadcasted_iota(jnp.int32, (t_e, 1), 0)
             < n_edges).astype(jnp.float32)

    h1 = _leaky(jnp.dot((cat * s1_ref[...]).astype(cdtype), w_ref[0:fin1, :],
                        preferred_element_type=jnp.float32) + b1_ref[...],
                leakiness)

    @pl.when(p == 0)
    def _phase0():
        m2_ref[...] += _moments(h1 * valid)

    @pl.when(p == 1)
    def _phase1():
        h2 = _leaky(jnp.dot((h1 * s2_ref[...]).astype(cdtype),
                            w_ref[fin1:fin1 + fp, :],
                            preferred_element_type=jnp.float32) + b2_ref[...],
                    leakiness)
        m3_ref[...] += _moments(h2 * valid)
        # stash the per-edge count marker in the spare padded lane `node_out`
        lane = lax.broadcasted_iota(jnp.int32, h2.shape, 1)
        h2c = jnp.where(lane == node_out, 1.0, h2)
        # pre-transposed (n_pad, t_e) scatter one-hot -> plain MXU dot;
        # sentinel (padding) edges carry col == n_pad -> all-zero column.
        smat = (lax.broadcasted_iota(jnp.int32, (n_pad, t_e), 0)
                == col_ref[...]).astype(cdtype)
        ssum_ref[...] += jnp.dot(smat, h2c.astype(cdtype),
                                 preferred_element_type=jnp.float32)


def _agg_kernel(n_edges, node_out, cdtype,
                ssum_ref, m3e_ref, w3_ref, vout1_ref,
                agg_ref, magg_ref, s3_ref, sh3_ref):
    # Finish node_mlp_1: BN3 + Linear3 folded through the scatter-mean.
    # Materializes agg once and accumulates its BN moments for node_mlp_2.
    n = pl.program_id(0)

    @pl.when(n == 0)
    def _init():
        magg_ref[...] = jnp.zeros_like(magg_ref)
        inv_e = 1.0 / n_edges
        m = m3e_ref[...]
        mu = m[0:1, :] * inv_e
        var = jnp.maximum(m[1:2, :] * inv_e - mu * mu, 0.0)
        s = vout1_ref[2:3, :] * lax.rsqrt(var + _EPS)
        s3_ref[...] = s
        sh3_ref[...] = vout1_ref[6:7, :] + jnp.dot(
            (vout1_ref[3:4, :] - mu * s).astype(cdtype), w3_ref[...],
            preferred_element_type=jnp.float32)

    ssum = ssum_ref[...]
    cnt = ssum[:, node_out:node_out + 1]        # counts live in a spare lane
    inv_cnt = 1.0 / jnp.maximum(cnt, 1.0)
    nonempty = (cnt > 0.0).astype(jnp.float32)
    agg = (jnp.dot((ssum * s3_ref[...]).astype(cdtype), w3_ref[...],
                   preferred_element_type=jnp.float32) * inv_cnt
           + nonempty * sh3_ref[...])
    agg_ref[...] = agg
    magg_ref[...] += _moments(agg)              # padded rows are exactly zero


def _mlp2_kernel(n_nodes, fin2, fp, leakiness, cdtype,
                 agg_ref, x_ref, m1n_ref, w_ref, vin_ref, vout_ref,
                 out_ref,
                 m2_ref, m3_ref, s1_ref, b1_ref, s2_ref, b2_ref, s3_ref, b3_ref):
    # grid = (3 phases, node tiles): BN2' moments, BN3' moments, output.
    p = pl.program_id(0)
    n = pl.program_id(1)
    inv_n = 1.0 / n_nodes
    t_n = agg_ref.shape[0]

    @pl.when(jnp.logical_and(p == 0, n == 0))
    def _init():
        m2_ref[...] = jnp.zeros_like(m2_ref)
        m3_ref[...] = jnp.zeros_like(m3_ref)
        s, b = _fold(m1n_ref[...], inv_n, vin_ref[0:1, :], vin_ref[1:2, :],
                     w_ref[0:fin2, :], vout_ref[4:5, :], cdtype)
        s1_ref[...] = s
        b1_ref[...] = b

    @pl.when(jnp.logical_and(p == 1, n == 0))
    def _fold_layer2():
        s, b = _fold(m2_ref[...], inv_n, vout_ref[0:1, :], vout_ref[1:2, :],
                     w_ref[fin2:fin2 + fp, :], vout_ref[5:6, :], cdtype)
        s2_ref[...] = s
        b2_ref[...] = b

    @pl.when(jnp.logical_and(p == 2, n == 0))
    def _fold_layer3():
        s, b = _fold(m3_ref[...], inv_n, vout_ref[2:3, :], vout_ref[3:4, :],
                     w_ref[fin2 + fp:fin2 + 2 * fp, :], vout_ref[6:7, :], cdtype)
        s3_ref[...] = s
        b3_ref[...] = b

    valid = (n * t_n + lax.broadcasted_iota(jnp.int32, (t_n, 1), 0)
             < n_nodes).astype(jnp.float32)
    # cat2 = [agg (lane-aligned 128-block), x] -- weight rows packed to match.
    cat = jnp.concatenate([agg_ref[...], x_ref[...]], axis=1)
    o1 = _leaky(jnp.dot((cat * s1_ref[...]).astype(cdtype), w_ref[0:fin2, :],
                        preferred_element_type=jnp.float32) + b1_ref[...],
                leakiness)

    @pl.when(p == 0)
    def _phase0():
        m2_ref[...] += _moments(o1 * valid)

    @pl.when(p >= 1)
    def _phase12():
        o2 = _leaky(jnp.dot((o1 * s2_ref[...]).astype(cdtype),
                            w_ref[fin2:fin2 + fp, :],
                            preferred_element_type=jnp.float32) + b2_ref[...],
                    leakiness)

        @pl.when(p == 1)
        def _phase1():
            m3_ref[...] += _moments(o2 * valid)

        @pl.when(p == 2)
        def _phase2():
            out_ref[...] = (jnp.dot((o2 * s3_ref[...]).astype(cdtype),
                                    w_ref[fin2 + fp:fin2 + 2 * fp, :],
                                    preferred_element_type=jnp.float32)
                            + b3_ref[...])


# ----------------------------- packing / wrapper -------------------------------


def _pad1(v, n, cv=0.0):
    return jnp.pad(v, (0, n - v.shape[0]), constant_values=cv)


def _pack_mlp1(p, node_in, edge_in, node_in_p, edge_in_p, fp, cdtype):
    """Pack node_mlp_1: w12=(fin1+fp,fp)[W1;W2] (cdtype), w3=(fp,fp),
    vin=(2,fin1)[g1;b1] (f32), vout=(8,fp)[g2,b2,g3,b3,c1,c2,c3,0] (f32)."""
    g1, b1, w1, c1, g2, b2, w2, c2, g3, b3, w3, c3 = p
    node_out = w1.shape[1]
    w1p = jnp.concatenate([
        jnp.pad(w1[:node_in], ((0, node_in_p - node_in), (0, 0))),
        jnp.pad(w1[node_in:], ((0, edge_in_p - edge_in), (0, 0)))], axis=0)
    w1p = jnp.pad(w1p, ((0, 0), (0, fp - node_out)))
    w2p = jnp.pad(w2, ((0, fp - node_out), (0, fp - node_out)))
    w3p = jnp.pad(w3, ((0, fp - node_out), (0, fp - node_out)))
    w12 = jnp.concatenate([w1p, w2p], axis=0).astype(cdtype)
    w3s = w3p.astype(cdtype)
    g1p = jnp.concatenate([_pad1(g1[:node_in], node_in_p, 1.0),
                           _pad1(g1[node_in:], edge_in_p, 1.0)])
    b1p = jnp.concatenate([_pad1(b1[:node_in], node_in_p, 0.0),
                           _pad1(b1[node_in:], edge_in_p, 0.0)])
    vin = jnp.stack([g1p, b1p], axis=0).astype(jnp.float32)
    pv = lambda v, cv=0.0: _pad1(v, fp, cv)
    vout = jnp.stack([pv(g2, 1.0), pv(b2), pv(g3, 1.0), pv(b3),
                      pv(c1), pv(c2), pv(c3),
                      jnp.zeros((fp,), jnp.float32)], axis=0).astype(jnp.float32)
    return w12, w3s, vin, vout


def _pack_mlp2(p, node_in, node_out, node_in_p, fp, cdtype):
    """Pack node_mlp_2 with features reordered to [agg(fp), x(node_in_p)]."""
    g1, b1, w1, c1, g2, b2, w2, c2, g3, b3, w3, c3 = p
    w1p = jnp.concatenate([
        jnp.pad(w1[node_in:], ((0, fp - node_out), (0, 0))),          # agg rows
        jnp.pad(w1[:node_in], ((0, node_in_p - node_in), (0, 0)))],   # x rows
        axis=0)
    w1p = jnp.pad(w1p, ((0, 0), (0, fp - node_out)))
    w2p = jnp.pad(w2, ((0, fp - node_out), (0, fp - node_out)))
    w3p = jnp.pad(w3, ((0, fp - node_out), (0, fp - node_out)))
    wcat = jnp.concatenate([w1p, w2p, w3p], axis=0).astype(cdtype)
    g1p = jnp.concatenate([_pad1(g1[node_in:], fp, 1.0),
                           _pad1(g1[:node_in], node_in_p, 1.0)])
    b1p = jnp.concatenate([_pad1(b1[node_in:], fp, 0.0),
                           _pad1(b1[:node_in], node_in_p, 0.0)])
    vin = jnp.stack([g1p, b1p], axis=0).astype(jnp.float32)
    pv = lambda v, cv=0.0: _pad1(v, fp, cv)
    vout = jnp.stack([pv(g2, 1.0), pv(b2), pv(g3, 1.0), pv(b3),
                      pv(c1), pv(c2), pv(c3),
                      jnp.zeros((fp,), jnp.float32)], axis=0).astype(jnp.float32)
    return wcat, vin, vout


def node_model_forward(x, edge_index, edge_attr, params1, params2, *,
                       node_out, leakiness=0.0, compute_dtype=jnp.bfloat16,
                       tile_e=1024, tile_n=512):
    f32 = jnp.float32
    x = x.astype(f32)
    edge_attr = edge_attr.astype(f32)
    n_nodes, node_in = x.shape
    n_edges, edge_in = edge_attr.shape

    fp = _round_up(node_out + 1, 128)       # hidden width, keeps a spare count lane
    node_in_p = _round_up(node_in, 16)
    edge_in_p = _round_up(edge_in, 16)
    fin1 = node_in_p + edge_in_p
    fin2 = fp + node_in_p                   # cat2 = [agg, x]

    assert tile_e % 128 == 0 and tile_n % 8 == 0
    t_e = min(tile_e, _round_up(n_edges, 128))
    t_n = min(tile_n, _round_up(n_nodes, 8))
    e_pad = _round_up(n_edges, t_e)
    n_pad = _round_up(n_nodes, t_n)

    row_idx = edge_index[0].astype(jnp.int32)
    col_idx = edge_index[1].astype(jnp.int32)

    x_p = jnp.pad(x, ((0, n_pad - n_nodes), (0, node_in_p - node_in)))
    ea_p = jnp.pad(edge_attr, ((0, e_pad - n_edges), (0, edge_in_p - edge_in)))
    row_p = jnp.pad(row_idx, (0, e_pad - n_edges)).reshape(e_pad, 1)
    col_p = jnp.pad(col_idx, (0, e_pad - n_edges),
                    constant_values=n_pad).reshape(1, e_pad)   # sentinel cols

    # BN1 moments of cat1 = [x[row], edge_attr] via the out-degree trick:
    # removes an entire edge-kernel phase (no gather rebuild for statistics).
    deg = jax.ops.segment_sum(jnp.ones((n_edges,), f32), row_idx,
                              num_segments=n_nodes)
    m1x = jnp.stack([deg @ x, deg @ (x * x)], axis=0)
    m1e = jnp.stack([edge_attr.sum(axis=0),
                     (edge_attr * edge_attr).sum(axis=0)], axis=0)
    m1 = jnp.concatenate([jnp.pad(m1x, ((0, 0), (0, node_in_p - node_in))),
                          jnp.pad(m1e, ((0, 0), (0, edge_in_p - edge_in)))], axis=1)

    w12, w3s, vin1, vout1 = _pack_mlp1(params1, node_in, edge_in, node_in_p,
                                       edge_in_p, fp, compute_dtype)
    w2cat, vin2, vout2 = _pack_mlp2(params2, node_in, node_out, node_in_p, fp,
                                    compute_dtype)

    vmem = _vmem_limit_bytes()
    red2 = pltpu.CompilerParams(dimension_semantics=("arbitrary", "arbitrary"),
                                vmem_limit_bytes=vmem)
    red1 = pltpu.CompilerParams(dimension_semantics=("arbitrary",),
                                vmem_limit_bytes=vmem)

    # -- kernel 1: edge side (gather + mlp1 layers 1-2 + scatter-sum/counts) ---
    ssum, m3e = pl.pallas_call(
        functools.partial(_edge_kernel, n_edges, fin1, fp, node_out, leakiness,
                          compute_dtype),
        grid_spec=pltpu.PrefetchScalarGridSpec(
            num_scalar_prefetch=0,
            grid=(2, e_pad // t_e),
            in_specs=[
                pl.BlockSpec((n_pad, node_in_p), lambda p, e: (0, 0)),
                pl.BlockSpec((t_e, edge_in_p), lambda p, e: (e, 0)),
                pl.BlockSpec((t_e, 1), lambda p, e: (e, 0)),
                pl.BlockSpec((1, t_e), lambda p, e: (0, e)),
                pl.BlockSpec((2, fin1), lambda p, e: (0, 0)),
                pl.BlockSpec((fin1 + fp, fp), lambda p, e: (0, 0)),
                pl.BlockSpec((2, fin1), lambda p, e: (0, 0)),
                pl.BlockSpec((8, fp), lambda p, e: (0, 0)),
            ],
            out_specs=[
                pl.BlockSpec((n_pad, fp), lambda p, e: (0, 0)),
                pl.BlockSpec((2, fp), lambda p, e: (0, 0)),
            ],
            scratch_shapes=[
                pltpu.VMEM((2, fp), f32), pltpu.VMEM((1, fin1), f32),
                pltpu.VMEM((1, fp), f32), pltpu.VMEM((1, fp), f32),
                pltpu.VMEM((1, fp), f32),
            ]),
        out_shape=(jax.ShapeDtypeStruct((n_pad, fp), f32),
                   jax.ShapeDtypeStruct((2, fp), f32)),
        compiler_params=red2,
    )(x_p, ea_p, row_p, col_p, m1, w12, vin1, vout1)

    # -- kernel 2: finish node_mlp_1 through the scatter-mean; cache agg -------
    agg, magg = pl.pallas_call(
        functools.partial(_agg_kernel, n_edges, node_out, compute_dtype),
        grid_spec=pltpu.PrefetchScalarGridSpec(
            num_scalar_prefetch=0,
            grid=(n_pad // t_n,),
            in_specs=[
                pl.BlockSpec((t_n, fp), lambda n: (n, 0)),
                pl.BlockSpec((2, fp), lambda n: (0, 0)),
                pl.BlockSpec((fp, fp), lambda n: (0, 0)),
                pl.BlockSpec((8, fp), lambda n: (0, 0)),
            ],
            out_specs=[
                pl.BlockSpec((t_n, fp), lambda n: (n, 0)),
                pl.BlockSpec((2, fp), lambda n: (0, 0)),
            ],
            scratch_shapes=[pltpu.VMEM((1, fp), f32), pltpu.VMEM((1, fp), f32)]),
        out_shape=(jax.ShapeDtypeStruct((n_pad, fp), f32),
                   jax.ShapeDtypeStruct((2, fp), f32)),
        compiler_params=red1,
    )(ssum, m3e, w3s, vout1)

    # BN moments of cat2 = [agg, x]; the x part is a trivial wrapper reduction.
    mx = jnp.stack([x.sum(axis=0), (x * x).sum(axis=0)], axis=0)
    m1n = jnp.concatenate(
        [magg, jnp.pad(mx, ((0, 0), (0, node_in_p - node_in)))], axis=1)

    # -- kernel 3: node_mlp_2 (3 phases: BN2' moments, BN3' moments, output) ---
    out_padded = pl.pallas_call(
        functools.partial(_mlp2_kernel, n_nodes, fin2, fp, leakiness,
                          compute_dtype),
        grid_spec=pltpu.PrefetchScalarGridSpec(
            num_scalar_prefetch=0,
            grid=(3, n_pad // t_n),
            in_specs=[
                pl.BlockSpec((t_n, fp), lambda p, n: (n, 0)),
                pl.BlockSpec((t_n, node_in_p), lambda p, n: (n, 0)),
                pl.BlockSpec((2, fin2), lambda p, n: (0, 0)),
                pl.BlockSpec((fin2 + 2 * fp, fp), lambda p, n: (0, 0)),
                pl.BlockSpec((2, fin2), lambda p, n: (0, 0)),
                pl.BlockSpec((8, fp), lambda p, n: (0, 0)),
            ],
            # phases 0-1 park the (never-written) output window on block 0, so
            # nothing is written back to HBM until phase 2 produces real data.
            out_specs=pl.BlockSpec((t_n, fp), lambda p, n: (n * (p // 2), 0)),
            scratch_shapes=[
                pltpu.VMEM((2, fp), f32), pltpu.VMEM((2, fp), f32),
                pltpu.VMEM((1, fin2), f32), pltpu.VMEM((1, fp), f32),
                pltpu.VMEM((1, fp), f32), pltpu.VMEM((1, fp), f32),
                pltpu.VMEM((1, fp), f32), pltpu.VMEM((1, fp), f32),
            ]),
        out_shape=jax.ShapeDtypeStruct((n_pad, fp), f32),
        compiler_params=red2,
    )(agg, x_p, m1n, w2cat, vin2, vout2)

    return out_padded[:n_nodes, :node_out]


# ----------------------------- params / reference ------------------------------


def _mlp_raw_params(key, fin, fout):
    # torch defaults: Linear U(+-1/sqrt(fan_in)); BatchNorm gamma=1, beta=0.
    def lin(k, a, b):
        kw, kb = jax.random.split(k)
        bound = 1.0 / float(a) ** 0.5
        return (jax.random.uniform(kw, (a, b), jnp.float32, -bound, bound),
                jax.random.uniform(kb, (b,), jnp.float32, -bound, bound))
    k1, k2, k3 = jax.random.split(key, 3)
    w1, c1 = lin(k1, fin, fout)
    w2, c2 = lin(k2, fout, fout)
    w3, c3 = lin(k3, fout, fout)
    ones = lambda n: jnp.ones((n,), jnp.float32)
    zeros = lambda n: jnp.zeros((n,), jnp.float32)
    return (ones(fin), zeros(fin), w1, c1,
            ones(fout), zeros(fout), w2, c2,
            ones(fout), zeros(fout), w3, c3)


def _reference(x, edge_index, edge_attr, p1, p2, leakiness):
    # Pure-JAX mirror of the PyTorch module (training-mode BatchNorm1d).
    def bn(h, g, b):
        mu = h.mean(0, keepdims=True)
        var = ((h - mu) ** 2).mean(0, keepdims=True)
        return (h - mu) / jnp.sqrt(var + _EPS) * g + b

    def mlp(h, p):
        g1, b1, w1, c1, g2, b2, w2, c2, g3, b3, w3, c3 = p
        h = bn(h, g1, b1) @ w1 + c1
        h = jnp.where(h >= 0, h, leakiness * h)
        h = bn(h, g2, b2) @ w2 + c2
        h = jnp.where(h >= 0, h, leakiness * h)
        return bn(h, g3, b3) @ w3 + c3

    row, col = edge_index
    h = mlp(jnp.concatenate([x[row], edge_attr], axis=1), p1)
    n = x.shape[0]
    summed = jax.ops.segment_sum(h, col, num_segments=n)
    counts = jax.ops.segment_sum(jnp.ones((h.shape[0],), jnp.float32), col,
                                 num_segments=n)
    agg = summed / jnp.maximum(counts, 1.0)[:, None]
    return mlp(jnp.concatenate([x, agg], axis=1), p2)


# ------------------------------------ main --------------------------------------

if __name__ == "__main__":
    node_in, edge_in, node_out = 16, 16, 32
    leakiness = 0.1

    key = jax.random.PRNGKey(0)
    kp1, kp2, kd = jax.random.split(key, 3)
    p1 = _mlp_raw_params(kp1, node_in + edge_in, node_out)
    p2 = _mlp_raw_params(kp2, node_in + node_out, node_out)

    def make_graph(k, n_nodes, n_edges):
        kx, ke, kr, kc = jax.random.split(k, 4)
        xg = jax.random.normal(kx, (n_nodes, node_in), jnp.float32)
        eg = jax.random.normal(ke, (n_edges, edge_in), jnp.float32)
        row = jax.random.randint(kr, (n_edges,), 0, n_nodes)
        col = jax.random.randint(kc, (n_edges,), 0, n_nodes)
        return xg, jnp.stack([row, col]).astype(jnp.int32), eg

    kd1, kd2 = jax.random.split(kd)
    cases = [("tile-divisible", make_graph(kd1, 64, 256)),
             ("padded", make_graph(kd2, 60, 250))]

    # Exact path (f32 compute): tight tolerance, both divisible and padded grids.
    for name, (xg, eig, eag) in cases:
        ref = _reference(xg, eig, eag, p1, p2, leakiness)
        out = jax.block_until_ready(node_model_forward(
            xg, eig, eag, p1, p2, node_out=node_out, leakiness=leakiness,
            compute_dtype=jnp.float32, tile_e=128, tile_n=32))
        assert out.shape == ref.shape
        err = float(jnp.max(jnp.abs(out - ref)))
        assert err < 2e-3, "%s f32 path mismatch, max abs err %.3e" % (name, err)

    # Fast path: bf16 MXU operands (one-hots exact; activations/weights rounded).
    xg, eig, eag = cases[0][1]
    ref = _reference(xg, eig, eag, p1, p2, leakiness)
    out_bf16 = jax.block_until_ready(node_model_forward(
        xg, eig, eag, p1, p2, node_out=node_out, leakiness=leakiness,
        compute_dtype=jnp.bfloat16, tile_e=128, tile_n=32))
    err_bf = float(jnp.max(jnp.abs(out_bf16 - ref)))
    assert err_bf < 3e-1, "bf16 path mismatch, max abs err %.3e" % err_bf

    print("KERNEL_OK")
</pallas_src>

<mosaic_0001>
module attributes {stable_mosaic.version = 11 : i64} {
  func.func @_edge_kernel(%arg0: i32, %arg1: i32, %arg2: memref<64x16xf32, #tpu.memory_space<vmem>>, %arg3: memref<128x16xf32, #tpu.memory_space<vmem>>, %arg4: memref<128x1xi32, #tpu.memory_space<vmem>>, %arg5: memref<1x128xi32, #tpu.memory_space<vmem>>, %arg6: memref<2x32xf32, #tpu.memory_space<vmem>>, %arg7: memref<160x128xf32, #tpu.memory_space<vmem>>, %arg8: memref<2x32xf32, #tpu.memory_space<vmem>>, %arg9: memref<8x128xf32, #tpu.memory_space<vmem>>, %arg10: memref<64x128xf32, #tpu.memory_space<vmem>>, %arg11: memref<2x128xf32, #tpu.memory_space<vmem>>, %arg12: memref<2x128xf32, #tpu.memory_space<vmem>>, %arg13: memref<1x32xf32, #tpu.memory_space<vmem>>, %arg14: memref<1x128xf32, #tpu.memory_space<vmem>>, %arg15: memref<1x128xf32, #tpu.memory_space<vmem>>, %arg16: memref<1x128xf32, #tpu.memory_space<vmem>>) attributes {dimension_semantics = [#tpu.dimension_semantics<arbitrary>, #tpu.dimension_semantics<arbitrary>], iteration_bounds = array<i64: 2, 2>, scalar_prefetch = 0 : i64, scratch_operands = 5 : i64, tpu.core_type = #tpu.core_type<tc>, window_params = [{pipeline_mode = #tpu.pipeline_mode<synchronous>, transform_indices = @transform_0, window_bounds = array<i64: 64, 16>}, {transform_indices = @transform_1, window_bounds = array<i64: 128, 16>}, {transform_indices = @transform_2, window_bounds = array<i64: 128, 1>}, {transform_indices = @transform_3, window_bounds = array<i64: 1, 128>}, {pipeline_mode = #tpu.pipeline_mode<synchronous>, transform_indices = @transform_4, window_bounds = array<i64: 2, 32>}, {pipeline_mode = #tpu.pipeline_mode<synchronous>, transform_indices = @transform_5, window_bounds = array<i64: 160, 128>}, {pipeline_mode = #tpu.pipeline_mode<synchronous>, transform_indices = @transform_6, window_bounds = array<i64: 2, 32>}, {pipeline_mode = #tpu.pipeline_mode<synchronous>, transform_indices = @transform_7, window_bounds = array<i64: 8, 128>}, {pipeline_mode = #tpu.pipeline_mode<synchronous>, transform_indices = @transform_8, window_bounds = array<i64: 64, 128>}, {pipeline_mode = #tpu.pipeline_mode<synchronous>, transform_indices = @transform_9, window_bounds = array<i64: 2, 128>}]} {
    %c0_i32 = arith.constant 0 : i32
    %0 = arith.cmpi eq, %arg0, %c0_i32 : i32
    %c0_i32_0 = arith.constant 0 : i32
    %1 = arith.cmpi eq, %arg1, %c0_i32_0 : i32
    %2 = arith.andi %0, %1 : i1
    %3 = arith.extui %2 : i1 to i32
    %c0_i32_1 = arith.constant 0 : i32
    %4 = arith.cmpi ne, %3, %c0_i32_1 : i32
    scf.if %4 {
      %cst_22 = arith.constant 0.000000e+00 : f32
      %47 = vector.broadcast %cst_22 : f32 to vector<64x128xf32>
      %c0_23 = arith.constant 0 : index
      %c0_24 = arith.constant 0 : index
      %48 = vector.load %arg10[%c0_23, %c0_24] : memref<64x128xf32, #tpu.memory_space<vmem>>, vector<64x128xf32>
      tpu.vector_store %arg10[%c0_23, %c0_24], %47 {strides = array<i32>} : memref<64x128xf32, #tpu.memory_space<vmem>>, vector<64x128xf32>,
      %cst_25 = arith.constant 0.000000e+00 : f32
      %49 = vector.broadcast %cst_25 : f32 to vector<2x128xf32>
      %c0_26 = arith.constant 0 : index
      %c0_27 = arith.constant 0 : index
      %50 = vector.load %arg11[%c0_26, %c0_27] : memref<2x128xf32, #tpu.memory_space<vmem>>, vector<2x128xf32>
      tpu.vector_store %arg11[%c0_26, %c0_27], %49 {strides = array<i32>} : memref<2x128xf32, #tpu.memory_space<vmem>>, vector<2x128xf32>,
      %cst_28 = arith.constant 0.000000e+00 : f32
      %51 = vector.broadcast %cst_28 : f32 to vector<2x128xf32>
      %c0_29 = arith.constant 0 : index
      %c0_30 = arith.constant 0 : index
      %52 = vector.load %arg12[%c0_29, %c0_30] : memref<2x128xf32, #tpu.memory_space<vmem>>, vector<2x128xf32>
      tpu.vector_store %arg12[%c0_29, %c0_30], %51 {strides = array<i32>} : memref<2x128xf32, #tpu.memory_space<vmem>>, vector<2x128xf32>,
      %c0_31 = arith.constant 0 : index
      %c0_32 = arith.constant 0 : index
      %53 = vector.load %arg6[%c0_31, %c0_32] : memref<2x32xf32, #tpu.memory_space<vmem>>, vector<2x32xf32>
      %c0_33 = arith.constant 0 : index
      %c0_34 = arith.constant 0 : index
      %54 = vector.load %arg8[%c0_33, %c0_34] : memref<2x32xf32, #tpu.memory_space<vmem>>, vector<1x32xf32>
      %c1 = arith.constant 1 : index
      %c0_35 = arith.constant 0 : index
      %55 = vector.load %arg8[%c1, %c0_35] : memref<2x32xf32, #tpu.memory_space<vmem>>, vector<1x32xf32>
      %c0_36 = arith.constant 0 : index
      %c0_37 = arith.constant 0 : index
      %56 = vector.load %arg7[%c0_36, %c0_37] : memref<160x128xf32, #tpu.memory_space<vmem>>, vector<32x128xf32>
      %c4 = arith.constant 4 : index
      %c0_38 = arith.constant 0 : index
      %57 = vector.load %arg9[%c4, %c0_38] : memref<8x128xf32, #tpu.memory_space<vmem>>, vector<1x128xf32>
      %58 = vector.extract_strided_slice %53 {offsets = [0, 0], sizes = [1, 32], strides = [1, 1]} : vector<2x32xf32> to vector<1x32xf32>
      %cst_39 = arith.constant 3.906250e-03 : f32
      %59 = vector.broadcast %cst_39 : f32 to vector<1x32xf32>
      %60 = arith.mulf %58, %59 : vector<1x32xf32>
      %61 = vector.extract_strided_slice %53 {offsets = [1, 0], sizes = [1, 32], strides = [1, 1]} : vector<2x32xf32> to vector<1x32xf32>
      %cst_40 = arith.constant 3.906250e-03 : f32
      %62 = vector.broadcast %cst_40 : f32 to vector<1x32xf32>
      %63 = arith.mulf %61, %62 : vector<1x32xf32>
      %64 = arith.mulf %60, %60 : vector<1x32xf32>
      %65 = arith.subf %63, %64 : vector<1x32xf32>
      %cst_41 = arith.constant 0.000000e+00 : f32
      %66 = vector.broadcast %cst_41 : f32 to vector<1x32xf32>
      %67 = arith.maximumf %65, %66 : vector<1x32xf32>
      %cst_42 = arith.constant 9.99999974E-6 : f32
      %68 = vector.broadcast %cst_42 : f32 to vector<1x32xf32>
      %69 = arith.addf %67, %68 : vector<1x32xf32>
      %70 = math.rsqrt %69 : vector<1x32xf32>
      %71 = arith.mulf %54, %70 : vector<1x32xf32>
      %72 = arith.mulf %60, %71 : vector<1x32xf32>
      %73 = arith.subf %55, %72 : vector<1x32xf32>
      %cst_43 = arith.constant dense<0.000000e+00> : vector<1x128xf32>
      %74 = tpu.matmul %73, %56, %cst_43 {dimension_numbers = #tpu.dot_dimension_numbers<[1], [0], [0], [1], [0, 0, 1, 1], [], []>} : vector<1x32xf32>, vector<32x128xf32>, vector<1x128xf32> -> vector<1x128xf32>
      %75 = arith.addf %57, %74 : vector<1x128xf32>
      %c0_44 = arith.constant 0 : index
      %c0_45 = arith.constant 0 : index
      %76 = vector.load %arg13[%c0_44, %c0_45] : memref<1x32xf32, #tpu.memory_space<vmem>>, vector<1x32xf32>
      tpu.vector_store %arg13[%c0_44, %c0_45], %71 {strides = array<i32>} : memref<1x32xf32, #tpu.memory_space<vmem>>, vector<1x32xf32>,
      %c0_46 = arith.constant 0 : index
      %c0_47 = arith.constant 0 : index
      %77 = vector.load %arg14[%c0_46, %c0_47] : memref<1x128xf32, #tpu.memory_space<vmem>>, vector<1x128xf32>
      tpu.vector_store %arg14[%c0_46, %c0_47], %75 {strides = array<i32>} : memref<1x128xf32, #tpu.memory_space<vmem>>, vector<1x128xf32>,
    } else {
    }
    %c1_i32 = arith.constant 1 : i32
    %5 = arith.cmpi eq, %arg0, %c1_i32 : i32
    %c0_i32_2 = arith.constant 0 : i32
    %6 = arith.cmpi eq, %arg1, %c0_i32_2 : i32
    %7 = arith.andi %5, %6 : i1
    %8 = arith.extui %7 : i1 to i32
    %c0_i32_3 = arith.constant 0 : i32
    %9 = arith.cmpi ne, %8, %c0_i32_3 : i32
    scf.if %9 {
      %c0_22 = arith.constant 0 : index
      %c0_23 = arith.constant 0 : index
      %47 = vector.load %arg12[%c0_22, %c0_23] : memref<2x128xf32, #tpu.memory_space<vmem>>, vector<2x128xf32>
      %c0_24 = arith.constant 0 : index
      %c0_25 = arith.constant 0 : index
      %48 = vector.load %arg9[%c0_24, %c0_25] : memref<8x128xf32, #tpu.memory_space<vmem>>, vector<1x128xf32>
      %c1 = arith.constant 1 : index
      %c0_26 = arith.constant 0 : index
      %49 = vector.load %arg9[%c1, %c0_26] : memref<8x128xf32, #tpu.memory_space<vmem>>, vector<1x128xf32>
      %c32 = arith.constant 32 : index
      %c0_27 = arith.constant 0 : index
      %50 = vector.load %arg7[%c32, %c0_27] : memref<160x128xf32, #tpu.memory_space<vmem>>, vector<128x128xf32>
      %c5 = arith.constant 5 : index
      %c0_28 = arith.constant 0 : index
      %51 = vector.load %arg9[%c5, %c0_28] : memref<8x128xf32, #tpu.memory_space<vmem>>, vector<1x128xf32>
      %52 = vector.extract_strided_slice %47 {offsets = [0, 0], sizes = [1, 128], strides = [1, 1]} : vector<2x128xf32> to vector<1x128xf32>
      %cst_29 = arith.constant 3.906250e-03 : f32
      %53 = vector.broadcast %cst_29 : f32 to vector<1x128xf32>
      %54 = arith.mulf %52, %53 : vector<1x128xf32>
      %55 = vector.extract_strided_slice %47 {offsets = [1, 0], sizes = [1, 128], strides = [1, 1]} : vector<2x128xf32> to vector<1x128xf32>
      %cst_30 = arith.constant 3.906250e-03 : f32
      %56 = vector.broadcast %cst_30 : f32 to vector<1x128xf32>
      %57 = arith.mulf %55, %56 : vector<1x128xf32>
      %58 = arith.mulf %54, %54 : vector<1x128xf32>
      %59 = arith.subf %57, %58 : vector<1x128xf32>
      %cst_31 = arith.constant 0.000000e+00 : f32
      %60 = vector.broadcast %cst_31 : f32 to vector<1x128xf32>
      %61 = arith.maximumf %59, %60 : vector<1x128xf32>
      %cst_32 = arith.constant 9.99999974E-6 : f32
      %62 = vector.broadcast %cst_32 : f32 to vector<1x128xf32>
      %63 = arith.addf %61, %62 : vector<1x128xf32>
      %64 = math.rsqrt %63 : vector<1x128xf32>
      %65 = arith.mulf %48, %64 : vector<1x128xf32>
      %66 = arith.mulf %54, %65 : vector<1x128xf32>
      %67 = arith.subf %49, %66 : vector<1x128xf32>
      %cst_33 = arith.constant dense<0.000000e+00> : vector<1x128xf32>
      %68 = tpu.matmul %67, %50, %cst_33 {dimension_numbers = #tpu.dot_dimension_numbers<[1], [0], [0], [1], [0, 0, 1, 1], [], []>} : vector<1x128xf32>, vector<128x128xf32>, vector<1x128xf32> -> vector<1x128xf32>
      %69 = arith.addf %51, %68 : vector<1x128xf32>
      %c0_34 = arith.constant 0 : index
      %c0_35 = arith.constant 0 : index
      %70 = vector.load %arg15[%c0_34, %c0_35] : memref<1x128xf32, #tpu.memory_space<vmem>>, vector<1x128xf32>
      tpu.vector_store %arg15[%c0_34, %c0_35], %65 {strides = array<i32>} : memref<1x128xf32, #tpu.memory_space<vmem>>, vector<1x128xf32>,
      %c0_36 = arith.constant 0 : index
      %c0_37 = arith.constant 0 : index
      %71 = vector.load %arg16[%c0_36, %c0_37] : memref<1x128xf32, #tpu.memory_space<vmem>>, vector<1x128xf32>
      tpu.vector_store %arg16[%c0_36, %c0_37], %69 {strides = array<i32>} : memref<1x128xf32, #tpu.memory_space<vmem>>, vector<1x128xf32>,
    } else {
    }
    %c0 = arith.constant 0 : index
    %c0_4 = arith.constant 0 : index
    %10 = vector.load %arg4[%c0, %c0_4] : memref<128x1xi32, #tpu.memory_space<vmem>>, vector<128x1xi32>
    %11 = tpu.iota {dimensions = array<i32: 1>} : vector<128x64xi32>
    %12 = vector.broadcast %10 : vector<128x1xi32> to vector<128x64xi32>
    %13 = arith.cmpi eq, %11, %12 : vector<128x64xi32>
    %14 = arith.extui %13 : vector<128x64xi1> to vector<128x64xi32>
    %15 = arith.sitofp %14 : vector<128x64xi32> to vector<128x64xf32>
    %c0_5 = arith.constant 0 : index
    %c0_6 = arith.constant 0 : index
    %16 = vector.load %arg2[%c0_5, %c0_6] : memref<64x16xf32, #tpu.memory_space<vmem>>, vector<64x16xf32>
    %cst = arith.constant dense<0.000000e+00> : vector<128x16xf32>
    %17 = tpu.matmul %15, %16, %cst {dimension_numbers = #tpu.dot_dimension_numbers<[1], [0], [0], [1], [0, 0, 1, 1], [], []>} : vector<128x64xf32>, vector<64x16xf32>, vector<128x16xf32> -> vector<128x16xf32>
    %c0_7 = arith.constant 0 : index
    %c0_8 = arith.constant 0 : index
    %18 = vector.load %arg3[%c0_7, %c0_8] : memref<128x16xf32, #tpu.memory_space<vmem>>, vector<128x16xf32>
    %19 = tpu.concatenate %17, %18 in 1 : vector<128x16xf32>, vector<128x16xf32> -> vector<128x32xf32>
    %c128_i32 = arith.constant 128 : i32
    %20 = arith.muli %arg1, %c128_i32 : i32
    %21 = tpu.iota {dimensions = array<i32: 0>} : vector<128x1xi32>
    %22 = vector.broadcast %20 : i32 to vector<128x1xi32>
    %23 = arith.addi %22, %21 : vector<128x1xi32>
    %c256_i32 = arith.constant 256 : i32
    %24 = vector.broadcast %c256_i32 : i32 to vector<128x1xi32>
    %25 = arith.cmpi slt, %23, %24 : vector<128x1xi32>
    %26 = arith.extui %25 : vector<128x1xi1> to vector<128x1xi32>
    %27 = arith.sitofp %26 : vector<128x1xi32> to vector<128x1xf32>
    %c0_9 = arith.constant 0 : index
    %c0_10 = arith.constant 0 : index
    %28 = vector.load %arg13[%c0_9, %c0_10] : memref<1x32xf32, #tpu.memory_space<vmem>>, vector<1x32xf32>
    %29 = vector.broadcast %28 : vector<1x32xf32> to vector<128x32xf32>
    %30 = arith.mulf %19, %29 : vector<128x32xf32>
    %c0_11 = arith.constant 0 : index
    %c0_12 = arith.constant 0 : index
    %31 = vector.load %arg7[%c0_11, %c0_12] : memref<160x128xf32, #tpu.memory_space<vmem>>, vector<32x128xf32>
    %cst_13 = arith.constant dense<0.000000e+00> : vector<128x128xf32>
    %32 = tpu.matmul %30, %31, %cst_13 {dimension_numbers = #tpu.dot_dimension_numbers<[1], [0], [0], [1], [0, 0, 1, 1], [], []>} : vector<128x32xf32>, vector<32x128xf32>, vector<128x128xf32> -> vector<128x128xf32>
    %c0_14 = arith.constant 0 : index
    %c0_15 = arith.constant 0 : index
    %33 = vector.load %arg14[%c0_14, %c0_15] : memref<1x128xf32, #tpu.memory_space<vmem>>, vector<1x128xf32>
    %34 = vector.broadcast %33 : vector<1x128xf32> to vector<128x128xf32>
    %35 = arith.addf %32, %34 : vector<128x128xf32>
    %cst_16 = arith.constant 0.000000e+00 : f32
    %36 = vector.broadcast %cst_16 : f32 to vector<128x128xf32>
    %37 = arith.cmpf oge, %35, %36 : vector<128x128xf32>
    %cst_17 = arith.constant 1.000000e-01 : f32
    %38 = vector.broadcast %cst_17 : f32 to vector<128x128xf32>
    %39 = arith.mulf %38, %35 : vector<128x128xf32>
    %40 = arith.select %37, %35, %39 : vector<128x128xi1>, vector<128x128xf32>
    %c0_i32_18 = arith.constant 0 : i32
    %41 = arith.cmpi eq, %arg0, %c0_i32_18 : i32
    %42 = arith.extui %41 : i1 to i32
    %c0_i32_19 = arith.constant 0 : i32
    %43 = arith.cmpi ne, %42, %c0_i32_19 : i32
    scf.if %43 {
      %c0_22 = arith.constant 0 : index
      %c0_23 = arith.constant 0 : index
      %47 = vector.load %arg12[%c0_22, %c0_23] : memref<2x128xf32, #tpu.memory_space<vmem>>, vector<2x128xf32>
      %48 = vector.broadcast %27 : vector<128x1xf32> to vector<128x128xf32>
      %49 = arith.mulf %40, %48 : vector<128x128xf32>
      %cst_24 = arith.constant dense<0.000000e+00> : vector<128xf32>
      %50 = vector.multi_reduction <add>, %49, %cst_24 [0] : vector<128x128xf32> to vector<128xf32>
      %51 = vector.shape_cast %50 : vector<128xf32> to vector<1x128xf32>
      %52 = arith.mulf %49, %49 : vector<128x128xf32>
      %cst_25 = arith.constant dense<0.000000e+00> : vector<128xf32>
      %53 = vector.multi_reduction <add>, %52, %cst_25 [0] : vector<128x128xf32> to vector<128xf32>
      %54 = vector.shape_cast %53 : vector<128xf32> to vector<1x128xf32>
      %55 = tpu.concatenate %51, %54 in 0 : vector<1x128xf32>, vector<1x128xf32> -> vector<2x128xf32>
      %56 = arith.addf %47, %55 : vector<2x128xf32>
      %c0_26 = arith.constant 0 : index
      %c0_27 = arith.constant 0 : index
      %57 = vector.load %arg12[%c0_26, %c0_27] : memref<2x128xf32, #tpu.memory_space<vmem>>, vector<2x128xf32>
      tpu.vector_store %arg12[%c0_26, %c0_27], %56 {strides = array<i32>} : memref<2x128xf32, #tpu.memory_space<vmem>>, vector<2x128xf32>,
    } else {
    }
    %c1_i32_20 = arith.constant 1 : i32
    %44 = arith.cmpi eq, %arg0, %c1_i32_20 : i32
    %45 = arith.extui %44 : i1 to i32
    %c0_i32_21 = arith.constant 0 : i32
    %46 = arith.cmpi ne, %45, %c0_i32_21 : i32
    scf.if %46 {
      %c0_22 = arith.constant 0 : index
      %c0_23 = arith.constant 0 : index
      %47 = vector.load %arg15[%c0_22, %c0_23] : memref<1x128xf32, #tpu.memory_space<vmem>>, vector<1x128xf32>
      %48 = vector.broadcast %47 : vector<1x128xf32> to vector<128x128xf32>
      %49 = arith.mulf %40, %48 : vector<128x128xf32>
      %c32 = arith.constant 32 : index
      %c0_24 = arith.constant 0 : index
      %50 = vector.load %arg7[%c32, %c0_24] : memref<160x128xf32, #tpu.memory_space<vmem>>, vector<128x128xf32>
      %cst_25 = arith.constant dense<0.000000e+00> : vector<128x128xf32>
      %51 = tpu.matmul %49, %50, %cst_25 {dimension_numbers = #tpu.dot_dimension_numbers<[1], [0], [0], [1], [0, 0, 1, 1], [], []>} : vector<128x128xf32>, vector<128x128xf32>, vector<128x128xf32> -> vector<128x128xf32>
      %c0_26 = arith.constant 0 : index
      %c0_27 = arith.constant 0 : index
      %52 = vector.load %arg16[%c0_26, %c0_27] : memref<1x128xf32, #tpu.memory_space<vmem>>, vector<1x128xf32>
      %53 = vector.broadcast %52 : vector<1x128xf32> to vector<128x128xf32>
      %54 = arith.addf %51, %53 : vector<128x128xf32>
      %cst_28 = arith.constant 0.000000e+00 : f32
      %55 = vector.broadcast %cst_28 : f32 to vector<128x128xf32>
      %56 = arith.cmpf oge, %54, %55 : vector<128x128xf32>
      %cst_29 = arith.constant 1.000000e-01 : f32
      %57 = vector.broadcast %cst_29 : f32 to vector<128x128xf32>
      %58 = arith.mulf %57, %54 : vector<128x128xf32>
      %59 = arith.select %56, %54, %58 : vector<128x128xi1>, vector<128x128xf32>
      %c0_30 = arith.constant 0 : index
      %c0_31 = arith.constant 0 : index
      %60 = vector.load %arg11[%c0_30, %c0_31] : memref<2x128xf32, #tpu.memory_space<vmem>>, vector<2x128xf32>
      %61 = vector.broadcast %27 : vector<128x1xf32> to vector<128x128xf32>
      %62 = arith.mulf %59, %61 : vector<128x128xf32>
      %cst_32 = arith.constant dense<0.000000e+00> : vector<128xf32>
      %63 = vector.multi_reduction <add>, %62, %cst_32 [0] : vector<128x128xf32> to vector<128xf32>
      %64 = vector.shape_cast %63 : vector<128xf32> to vector<1x128xf32>
      %65 = arith.mulf %62, %62 : vector<128x128xf32>
      %cst_33 = arith.constant dense<0.000000e+00> : vector<128xf32>
      %66 = vector.multi_reduction <add>, %65, %cst_33 [0] : vector<128x128xf32> to vector<128xf32>
      %67 = vector.shape_cast %66 : vector<128xf32> to vector<1x128xf32>
      %68 = tpu.concatenate %64, %67 in 0 : vector<1x128xf32>, vector<1x128xf32> -> vector<2x128xf32>
      %69 = arith.addf %60, %68 : vector<2x128xf32>
      %c0_34 = arith.constant 0 : index
      %c0_35 = arith.constant 0 : index
      %70 = vector.load %arg11[%c0_34, %c0_35] : memref<2x128xf32, #tpu.memory_space<vmem>>, vector<2x128xf32>
      tpu.vector_store %arg11[%c0_34, %c0_35], %69 {strides = array<i32>} : memref<2x128xf32, #tpu.memory_space<vmem>>, vector<2x128xf32>,
      %71 = tpu.iota {dimensions = array<i32: 1>} : vector<128x128xi32>
      %c32_i32 = arith.constant 32 : i32
      %72 = vector.broadcast %c32_i32 : i32 to vector<128x128xi32>
      %73 = arith.cmpi eq, %71, %72 : vector<128x128xi32>
      %cst_36 = arith.constant 1.000000e+00 : f32
      %74 = vector.broadcast %cst_36 : f32 to vector<128x128xf32>
      %75 = arith.select %73, %74, %59 : vector<128x128xi1>, vector<128x128xf32>
      %76 = tpu.iota {dimensions = array<i32: 0>} : vector<64x128xi32>
      %c0_37 = arith.constant 0 : index
      %c0_38 = arith.constant 0 : index
      %77 = vector.load %arg5[%c0_37, %c0_38] : memref<1x128xi32, #tpu.memory_space<vmem>>, vector<1x128xi32>
      %78 = vector.broadcast %77 : vector<1x128xi32> to vector<64x128xi32>
      %79 = arith.cmpi eq, %76, %78 : vector<64x128xi32>
      %80 = arith.extui %79 : vector<64x128xi1> to vector<64x128xi32>
      %81 = arith.sitofp %80 : vector<64x128xi32> to vector<64x128xf32>
      %c0_39 = arith.constant 0 : index
      %c0_40 = arith.constant 0 : index
      %82 = vector.load %arg10[%c0_39, %c0_40] : memref<64x128xf32, #tpu.memory_space<vmem>>, vector<64x128xf32>
      %cst_41 = arith.constant dense<0.000000e+00> : vector<64x128xf32>
      %83 = tpu.matmul %81, %75, %cst_41 {dimension_numbers = #tpu.dot_dimension_numbers<[1], [0], [0], [1], [0, 0, 1, 1], [], []>} : vector<64x128xf32>, vector<128x128xf32>, vector<64x128xf32> -> vector<64x128xf32>
      %84 = arith.addf %82, %83 : vector<64x128xf32>
      %c0_42 = arith.constant 0 : index
      %c0_43 = arith.constant 0 : index
      %85 = vector.load %arg10[%c0_42, %c0_43] : memref<64x128xf32, #tpu.memory_space<vmem>>, vector<64x128xf32>
      tpu.vector_store %arg10[%c0_42, %c0_43], %84 {strides = array<i32>} : memref<64x128xf32, #tpu.memory_space<vmem>>, vector<64x128xf32>,
    } else {
    }
    return
  }
  func.func @transform_0(%arg0: i32, %arg1: i32) -> (i32, i32) {
    %c0_i32 = arith.constant 0 : i32
    %c0_i32_0 = arith.constant 0 : i32
    %c0_i32_1 = arith.constant 0 : i32
    return %c0_i32, %c0_i32_0 : i32, i32
  }
  func.func @transform_1(%arg0: i32, %arg1: i32) -> (i32, i32) {
    %c0_i32 = arith.constant 0 : i32
    %c0_i32_0 = arith.constant 0 : i32
    return %arg1, %c0_i32 : i32, i32
  }
  func.func @transform_2(%arg0: i32, %arg1: i32) -> (i32, i32) {
    %c0_i32 = arith.constant 0 : i32
    %c0_i32_0 = arith.constant 0 : i32
    return %arg1, %c0_i32 : i32, i32
  }
  func.func @transform_3(%arg0: i32, %arg1: i32) -> (i32, i32) {
    %c0_i32 = arith.constant 0 : i32
    %c0_i32_0 = arith.constant 0 : i32
    return %c0_i32, %arg1 : i32, i32
  }
  func.func @transform_4(%arg0: i32, %arg1: i32) -> (i32, i32) {
    %c0_i32 = arith.constant 0 : i32
    %c0_i32_0 = arith.constant 0 : i32
    %c0_i32_1 = arith.constant 0 : i32
    return %c0_i32, %c0_i32_0 : i32, i32
  }
  func.func @transform_5(%arg0: i32, %arg1: i32) -> (i32, i32) {
    %c0_i32 = arith.constant 0 : i32
    %c0_i32_0 = arith.constant 0 : i32
    %c0_i32_1 = arith.constant 0 : i32
    return %c0_i32, %c0_i32_0 : i32, i32
  }
  func.func @transform_6(%arg0: i32, %arg1: i32) -> (i32, i32) {
    %c0_i32 = arith.constant 0 : i32
    %c0_i32_0 = arith.constant 0 : i32
    %c0_i32_1 = arith.constant 0 : i32
    return %c0_i32, %c0_i32_0 : i32, i32
  }
  func.func @transform_7(%arg0: i32, %arg1: i32) -> (i32, i32) {
    %c0_i32 = arith.constant 0 : i32
    %c0_i32_0 = arith.constant 0 : i32
    %c0_i32_1 = arith.constant 0 : i32
    return %c0_i32, %c0_i32_0 : i32, i32
  }
  func.func @transform_8(%arg0: i32, %arg1: i32) -> (i32, i32) {
    %c0_i32 = arith.constant 0 : i32
    %c0_i32_0 = arith.constant 0 : i32
    %c0_i32_1 = arith.constant 0 : i32
    return %c0_i32, %c0_i32_0 : i32, i32
  }
  func.func @transform_9(%arg0: i32, %arg1: i32) -> (i32, i32) {
    %c0_i32 = arith.constant 0 : i32
    %c0_i32_0 = arith.constant 0 : i32
    %c0_i32_1 = arith.constant 0 : i32
    return %c0_i32, %c0_i32_0 : i32, i32
  }
}

</mosaic_0001>

<llo_original>
// kernel: tpu_custom_call.1
$region0: #{tpu_custom_call.1}
  #allocation0 [shape = 'u32[]', space=smem, size = 0x4, offset = 0x4, fixed_abs, tag = 'smem constant byte address 0x4 - core index']
  #allocation1 [shape = 'u32[144,128]{1,0:T(1,128)}', space=vmem, size = 0x12000, scoped, tag = 'internal scratch']
  #allocation2 [shape = 'f32[2,128]{1,0:T(2,128)}', space=vmem, size = 0x400, scoped, tag = 'scratch operand']
  #allocation3 [shape = 'f32[1,32]{1,0:T(1,128)}', space=vmem, size = 0x200, scoped, tag = 'scratch operand']
  #allocation4 [shape = 'f32[1,128]{1,0:T(1,128)}', space=vmem, size = 0x200, scoped, tag = 'scratch operand']
  #allocation5 [shape = 'f32[1,128]{1,0:T(1,128)}', space=vmem, size = 0x200, scoped, tag = 'scratch operand']
  #allocation6 [shape = 'f32[1,128]{1,0:T(1,128)}', space=vmem, size = 0x200, scoped, tag = 'scratch operand']
  %s0 = inlined_call_operand.vmem [shape: f32[64,16], index: 0, kind: input, shape index: {}]
  %s1 = inlined_call_operand.vmem [shape: f32[256,16], index: 1, kind: input, shape index: {}]
  %s2 = inlined_call_operand.vmem [shape: s32[256,1], index: 2, kind: input, shape index: {}]
  %s3 = inlined_call_operand.vmem [shape: s32[1,256], index: 3, kind: input, shape index: {}]
  %s4 = inlined_call_operand.vmem [shape: f32[2,32], index: 4, kind: input, shape index: {}]
  %s5 = inlined_call_operand.vmem [shape: f32[160,128], index: 5, kind: input, shape index: {}]
  %s6 = inlined_call_operand.vmem [shape: f32[2,32], index: 6, kind: input, shape index: {}]
  %s7 = inlined_call_operand.vmem [shape: f32[8,128], index: 7, kind: input, shape index: {}]
  %s8 = inlined_call_operand.hbm [shape: f32[64,128], index: 8, kind: output, shape index: {0}]
  %s9 = inlined_call_operand.hbm [shape: f32[2,128], index: 9, kind: output, shape index: {1}]
  %10 = xla_tuple %s8, %s9
  %s11 = sld [smem:[#allocation0]]
  $region89: #{tpu_custom_call.1} parent=0
    _
  %s13 = ssub.s32 1, %s11
  %s14 = scalar_select 0, %s13, %s11
  $region1: #{tpu_custom_call.1} parent=0
    #allocation7 [shape = 'u8[32768]{0}', space=vmem, size = 0x8000, scoped, tag = 'output window, operand 0, single buffered']
    #allocation8 [shape = 's32[2]{0}', space=sflag, size = 0x8, scoped, tag = 'scoped memory for tpu_custom_call.1']
    #allocation9 [shape = 'u8[1024]{0}', space=vmem, size = 0x400, scoped, tag = 'output window, operand 1, single buffered']
    #allocation10 [shape = 's32[1]{0}', space=sflag, size = 0x4, scoped, tag = 'scoped memory for tpu_custom_call.1']
    %15 = vsyncpa [#allocation8], 0
    %16 = vsyncpa [#allocation10], 0
    loop: start=0, step=1, limit=6
    $region2: #{tpu_custom_call.1} parent=1 // loop_pre_header
      _
    $region3: #{tpu_custom_call.1} parent=1 // loop_header
      %s18 = sphi 0, %s22
      %p19 = scmp.ge.s32.totalorder %s18, 6
      %s25 = sphi 0, %s37
      %s26 = sphi 0, %s33
      %s27 = sphi 0, %s25
      %s28 = sphi 0, %s26
      %s29 = sphi 0, %s27
      %s30 = sphi 0, %s28
      %s38 = sphi 0, %s38
      %s40 = sphi 0, %s38
      %s41 = sphi 0, %s40
      %s55 = sphi 0, %s41
      %s61 = sphi 0, %s63
      %s64 = sphi 0, %s61
      %s65 = sphi 0, %s64
      %s81 = sphi 0, %s65
      %s87 = sphi 0, %s89
      %s90 = sphi 0, %s87
      %s91 = sphi 0, %s90
      %s107 = sphi 0, %s91
      %s113 = sphi 0, %s115
      %s116 = sphi 0, %s113
      %s117 = sphi 0, %s116
      %s133 = sphi 0, %s117
      %s137 = sphi 0, %s137
      %s139 = sphi 0, %s137
      %s140 = sphi 0, %s139
      %s154 = sphi 0, %s140
      %s158 = sphi 0, %s158
      %s160 = sphi 0, %s158
      %s161 = sphi 0, %s160
      %s175 = sphi 0, %s161
      %s179 = sphi 0, %s179
      %s181 = sphi 0, %s179
      %s182 = sphi 0, %s181
      %s196 = sphi 0, %s182
      %s200 = sphi 0, %s200
      %s202 = sphi 0, %s200
      %s203 = sphi 0, %s202
      %s217 = sphi 0, %s203
      %s221 = sphi 0, %s221
      %s223 = sphi 0, %s221
      %s224 = sphi 0, %s223
      %s238 = sphi 0, %s224
      %s242 = sphi 0, %s242
      %s244 = sphi 0, %s242
      %s245 = sphi 0, %s244
      %s259 = sphi 0, %s245
    $region4: #{tpu_custom_call.1} parent=1 // loop_header_branch
      %21 = sbr.rel (%p19) target = $region8
    $region5: #{tpu_custom_call.1} parent=1 // loop_body
      %s23 = ssub.s32 %s18, 1
      %s24 = ssub.s32 %s18, 2
      %s31 = sadd.s32 1, %s26
      %p32 = scmp.ge.s32.totalorder %s31, 2
      %s33 = scalar_select %p32, 0, %s31
      %s34 = sadd.s32 1, %s25
      %s35 = scalar_select %p32, %s34, %s25
      %p36 = scmp.ge.s32.totalorder %s35, 2
      %s37 = scalar_select %p36, 0, %s35
      %s39 = sadd.s32 %s38, 1
      %p42 = scmp.eq.s32.totalorder %s18, 3
      %p43 = scmp.ne.s32.totalorder %s38, %s40
      %p44 = scmp.eq.s32.totalorder %s18, 0
      %p45 = por %p43, %p44
      %p46 = scmp.ne.s32.totalorder %s38, %s40
      %p47 = scmp.eq.s32.totalorder %s23, 3
      %p48 = por %p46, %p47
      %p49 = scmp.ne.s32.totalorder %s40, %s41
      %p50 = scmp.eq.s32.totalorder %s23, 0
      %p51 = por %p49, %p50
      %p52 = scmp.ne.s32.totalorder %s40, %s41
      %p53 = scmp.eq.s32.totalorder %s24, 3
      %p54 = por %p52, %p53
      %p56 = scmp.ne.s32.totalorder %s41, %s55
      %p57 = scmp.eq.s32.totalorder %s24, 0
      %p58 = por %p56, %p57
      %s59 = ssub.s32 %s26, %s33
      %p60 = scmp.eq.s32.totalorder %s59, 0
      %s62 = sadd.s32 %s61, 1
      %s63 = scalar_select %p60, %s61, %s62
      %p66 = pneg %p60
      %p67 = scmp.eq.s32.totalorder %s18, 3
      %p68 = por %p66, %p67
      %p69 = scmp.ne.s32.totalorder %s61, %s64
      %p70 = scmp.eq.s32.totalorder %s18, 0
      %p71 = por %p69, %p70
      %p72 = scmp.ne.s32.totalorder %s61, %s64
      %p73 = scmp.eq.s32.totalorder %s23, 3
      %p74 = por %p72, %p73
      %p75 = scmp.ne.s32.totalorder %s64, %s65
      %p76 = scmp.eq.s32.totalorder %s23, 0
      %p77 = por %p75, %p76
      %p78 = scmp.ne.s32.totalorder %s64, %s65
      %p79 = scmp.eq.s32.totalorder %s24, 3
      %p80 = por %p78, %p79
      %p82 = scmp.ne.s32.totalorder %s65, %s81
      %p83 = scmp.eq.s32.totalorder %s24, 0
      %p84 = por %p82, %p83
      %s85 = ssub.s32 %s26, %s33
      %p86 = scmp.eq.s32.totalorder %s85, 0
      %s88 = sadd.s32 %s87, 1
      %s89 = scalar_select %p86, %s87, %s88
      %p92 = pneg %p86
      %p93 = scmp.eq.s32.totalorder %s18, 3
      %p94 = por %p92, %p93
      %p95 = scmp.ne.s32.totalorder %s87, %s90
      %p96 = scmp.eq.s32.totalorder %s18, 0
      %p97 = por %p95, %p96
      %p98 = scmp.ne.s32.totalorder %s87, %s90
      %p99 = scmp.eq.s32.totalorder %s23, 3
      %p100 = por %p98, %p99
      %p101 = scmp.ne.s32.totalorder %s90, %s91
      %p102 = scmp.eq.s32.totalorder %s23, 0
      %p103 = por %p101, %p102
      %p104 = scmp.ne.s32.totalorder %s90, %s91
      %p105 = scmp.eq.s32.totalorder %s24, 3
      %p106 = por %p104, %p105
      %p108 = scmp.ne.s32.totalorder %s91, %s107
      %p109 = scmp.eq.s32.totalorder %s24, 0
      %p110 = por %p108, %p109
      %s111 = ssub.s32 %s26, %s33
      %p112 = scmp.eq.s32.totalorder %s111, 0
      %s114 = sadd.s32 %s113, 1
      %s115 = scalar_select %p112, %s113, %s114
      %p118 = pneg %p112
      %p119 = scmp.eq.s32.totalorder %s18, 3
      %p120 = por %p118, %p119
      %p121 = scmp.ne.s32.totalorder %s113, %s116
      %p122 = scmp.eq.s32.totalorder %s18, 0
      %p123 = por %p121, %p122
      %p124 = scmp.ne.s32.totalorder %s113, %s116
      %p125 = scmp.eq.s32.totalorder %s23, 3
      %p126 = por %p124, %p125
      %p127 = scmp.ne.s32.totalorder %s116, %s117
      %p128 = scmp.eq.s32.totalorder %s23, 0
      %p129 = por %p127, %p128
      %p130 = scmp.ne.s32.totalorder %s116, %s117
      %p131 = scmp.eq.s32.totalorder %s24, 3
      %p132 = por %p130, %p131
      %p134 = scmp.ne.s32.totalorder %s117, %s133
      %p135 = scmp.eq.s32.totalorder %s24, 0
      %p136 = por %p134, %p135
      %s138 = sadd.s32 %s137, 1
      %p141 = scmp.eq.s32.totalorder %s18, 3
      %p142 = scmp.ne.s32.totalorder %s137, %s139
      %p143 = scmp.eq.s32.totalorder %s18, 0
      %p144 = por %p142, %p143
      %p145 = scmp.ne.s32.totalorder %s137, %s139
      %p146 = scmp.eq.s32.totalorder %s23, 3
      %p147 = por %p145, %p146
      %p148 = scmp.ne.s32.totalorder %s139, %s140
      %p149 = scmp.eq.s32.totalorder %s23, 0
      %p150 = por %p148, %p149
      %p151 = scmp.ne.s32.totalorder %s139, %s140
      %p152 = scmp.eq.s32.totalorder %s24, 3
      %p153 = por %p151, %p152
      %p155 = scmp.ne.s32.totalorder %s140, %s154
      %p156 = scmp.eq.s32.totalorder %s24, 0
      %p157 = por %p155, %p156
      %s159 = sadd.s32 %s158, 1
      %p162 = scmp.eq.s32.totalorder %s18, 3
      %p163 = scmp.ne.s32.totalorder %s158, %s160
      %p164 = scmp.eq.s32.totalorder %s18, 0
      %p165 = por %p163, %p164
      %p166 = scmp.ne.s32.totalorder %s158, %s160
      %p167 = scmp.eq.s32.totalorder %s23, 3
      %p168 = por %p166, %p167
      %p169 = scmp.ne.s32.totalorder %s160, %s161
      %p170 = scmp.eq.s32.totalorder %s23, 0
      %p171 = por %p169, %p170
      %p172 = scmp.ne.s32.totalorder %s160, %s161
      %p173 = scmp.eq.s32.totalorder %s24, 3
      %p174 = por %p172, %p173
      %p176 = scmp.ne.s32.totalorder %s161, %s175
      %p177 = scmp.eq.s32.totalorder %s24, 0
      %p178 = por %p176, %p177
      %s180 = sadd.s32 %s179, 1
      %p183 = scmp.eq.s32.totalorder %s18, 3
      %p184 = scmp.ne.s32.totalorder %s179, %s181
      %p185 = scmp.eq.s32.totalorder %s18, 0
      %p186 = por %p184, %p185
      %p187 = scmp.ne.s32.totalorder %s179, %s181
      %p188 = scmp.eq.s32.totalorder %s23, 3
      %p189 = por %p187, %p188
      %p190 = scmp.ne.s32.totalorder %s181, %s182
      %p191 = scmp.eq.s32.totalorder %s23, 0
      %p192 = por %p190, %p191
      %p193 = scmp.ne.s32.totalorder %s181, %s182
      %p194 = scmp.eq.s32.totalorder %s24, 3
      %p195 = por %p193, %p194
      %p197 = scmp.ne.s32.totalorder %s182, %s196
      %p198 = scmp.eq.s32.totalorder %s24, 0
      %p199 = por %p197, %p198
      %s201 = sadd.s32 %s200, 1
      %p204 = scmp.eq.s32.totalorder %s18, 3
      %p205 = scmp.ne.s32.totalorder %s200, %s202
      %p206 = scmp.eq.s32.totalorder %s18, 0
      %p207 = por %p205, %p206
      %p208 = scmp.ne.s32.totalorder %s200, %s202
      %p209 = scmp.eq.s32.totalorder %s23, 3
      %p210 = por %p208, %p209
      %p211 = scmp.ne.s32.totalorder %s202, %s203
      %p212 = scmp.eq.s32.totalorder %s23, 0
      %p213 = por %p211, %p212
      %p214 = scmp.ne.s32.totalorder %s202, %s203
      %p215 = scmp.eq.s32.totalorder %s24, 3
      %p216 = por %p214, %p215
      %p218 = scmp.ne.s32.totalorder %s203, %s217
      %p219 = scmp.eq.s32.totalorder %s24, 0
      %p220 = por %p218, %p219
      %s222 = sadd.s32 %s221, 1
      %p225 = scmp.eq.s32.totalorder %s18, 3
      %p226 = scmp.ne.s32.totalorder %s221, %s223
      %p227 = scmp.eq.s32.totalorder %s18, 0
      %p228 = por %p226, %p227
      %p229 = scmp.ne.s32.totalorder %s221, %s223
      %p230 = scmp.eq.s32.totalorder %s23, 3
      %p231 = por %p229, %p230
      %p232 = scmp.ne.s32.totalorder %s223, %s224
      %p233 = scmp.eq.s32.totalorder %s23, 0
      %p234 = por %p232, %p233
      %p235 = scmp.ne.s32.totalorder %s223, %s224
      %p236 = scmp.eq.s32.totalorder %s24, 3
      %p237 = por %p235, %p236
      %p239 = scmp.ne.s32.totalorder %s224, %s238
      %p240 = scmp.eq.s32.totalorder %s24, 0
      %p241 = por %p239, %p240
      %s243 = sadd.s32 %s242, 1
      %p246 = scmp.eq.s32.totalorder %s18, 3
      %p247 = scmp.ne.s32.totalorder %s242, %s244
      %p248 = scmp.eq.s32.totalorder %s18, 0
      %p249 = por %p247, %p248
      %p250 = scmp.ne.s32.totalorder %s242, %s244
      %p251 = scmp.eq.s32.totalorder %s23, 3
      %p252 = por %p250, %p251
      %p253 = scmp.ne.s32.totalorder %s244, %s245
      %p254 = scmp.eq.s32.totalorder %s23, 0
      %p255 = por %p253, %p254
      %p256 = scmp.ne.s32.totalorder %s244, %s245
      %p257 = scmp.eq.s32.totalorder %s24, 3
      %p258 = por %p256, %p257
      %p260 = scmp.ne.s32.totalorder %s245, %s259
      %p261 = scmp.eq.s32.totalorder %s24, 0
      %p262 = por %p260, %p261
      %p263 = scmp.le.s32.totalorder 1, %s18
      %p264 = scmp.lt.s32.totalorder %s18, 5
      %p265 = pnand %p263, %p264
      %p266 = pneg %p265
      // Predicated region
      $region9: #{tpu_custom_call.1} parent=5 // pred_check
        _
      $region10: #{tpu_custom_call.1} parent=5 // pred_check_branch
        %268 = sbr.rel (%p265) target = $region12
      $region11: #{tpu_custom_call.1} parent=5 // pred_region
        %s269 = ssub.s32 %s18, 1
        // Predicated region
        $region13: #{tpu_custom_call.1} parent=11 // pred_check
          %p270 = pneg %p51
        $region14: #{tpu_custom_call.1} parent=11 // pred_check_branch
          %272 = sbr.rel (%p270) target = $region16
        $region15: #{tpu_custom_call.1} parent=11 // pred_region
          _
        $region16: #{tpu_custom_call.1} parent=11 // pred_fallthru
          _
        // Predicated region
        $region17: #{tpu_custom_call.1} parent=11 // pred_check
          %p273 = pneg %p150
        $region18: #{tpu_custom_call.1} parent=11 // pred_check_branch
          %275 = sbr.rel (%p273) target = $region20
        $region19: #{tpu_custom_call.1} parent=11 // pred_region
          _
        $region20: #{tpu_custom_call.1} parent=11 // pred_fallthru
          _
        // Predicated region
        $region21: #{tpu_custom_call.1} parent=11 // pred_check
          %p276 = pneg %p171
        $region22: #{tpu_custom_call.1} parent=11 // pred_check_branch
          %278 = sbr.rel (%p276) target = $region24
        $region23: #{tpu_custom_call.1} parent=11 // pred_region
          _
        $region24: #{tpu_custom_call.1} parent=11 // pred_fallthru
          _
        // Predicated region
        $region25: #{tpu_custom_call.1} parent=11 // pred_check
          %p279 = pneg %p192
        $region26: #{tpu_custom_call.1} parent=11 // pred_check_branch
          %281 = sbr.rel (%p279) target = $region28
        $region27: #{tpu_custom_call.1} parent=11 // pred_region
          _
        $region28: #{tpu_custom_call.1} parent=11 // pred_fallthru
          _
        // Predicated region
        $region29: #{tpu_custom_call.1} parent=11 // pred_check
          %p282 = pneg %p213
        $region30: #{tpu_custom_call.1} parent=11 // pred_check_branch
          %284 = sbr.rel (%p282) target = $region32
        $region31: #{tpu_custom_call.1} parent=11 // pred_region
          _
        $region32: #{tpu_custom_call.1} parent=11 // pred_fallthru
          _
      $region12: #{tpu_custom_call.1} parent=5 // pred_fallthru
        _
      %p285 = scmp.lt.s32.totalorder %s18, 4
      // Predicated region
      $region33: #{tpu_custom_call.1} parent=5 // pred_check
        %p286 = pneg %p285
      $region34: #{tpu_custom_call.1} parent=5 // pred_check_branch
        %288 = sbr.rel (%p286) target = $region36
      $region35: #{tpu_custom_call.1} parent=5 // pred_region
        // Predicated region
        $region37: #{tpu_custom_call.1} parent=35 // pred_check
          %p289 = pneg %p71
        $region38: #{tpu_custom_call.1} parent=35 // pred_check_branch
          %291 = sbr.rel (%p289) target = $region40
        $region39: #{tpu_custom_call.1} parent=35 // pred_region
          %s292 = smul.u32 16, %s26
          %p293 = scmp.lt.s32.totalorder %s292, 31
          %s294 = scalar_select %p293, %s292, 31
          %s295 = smul.addr %s294, 8
          %s296 = scalar_lea.vmem %s1, %s295
          %s297 = smul.u32 16, %s26
        $region40: #{tpu_custom_call.1} parent=35 // pred_fallthru
          _
        // Predicated region
        $region41: #{tpu_custom_call.1} parent=35 // pred_check
          %p298 = pneg %p97
        $region42: #{tpu_custom_call.1} parent=35 // pred_check_branch
          %300 = sbr.rel (%p298) target = $region44
        $region43: #{tpu_custom_call.1} parent=35 // pred_region
          %s301 = smul.u32 16, %s26
          %p302 = scmp.lt.s32.totalorder %s301, 31
          %s303 = scalar_select %p302, %s301, 31
          %s304 = smul.addr %s303, 8
          %s305 = scalar_lea.vmem %s2, %s304
          %s306 = smul.u32 16, %s26
        $region44: #{tpu_custom_call.1} parent=35 // pred_fallthru
          _
        // Predicated region
        $region45: #{tpu_custom_call.1} parent=35 // pred_check
          %p307 = pneg %p123
        $region46: #{tpu_custom_call.1} parent=35 // pred_check_branch
          %309 = sbr.rel (%p307) target = $region48
        $region47: #{tpu_custom_call.1} parent=35 // pred_region
          %p310 = scmp.lt.s32.totalorder %s26, 1
          %s311 = scalar_select %p310, %s26, 1
          %s312 = scalar_lea.vmem %s3, %s311
        $region48: #{tpu_custom_call.1} parent=35 // pred_fallthru
          _
      $region36: #{tpu_custom_call.1} parent=5 // pred_fallthru
        _
      %p313 = scmp.le.s32.totalorder 1, %s18
      %p314 = scmp.lt.s32.totalorder %s18, 5
      %p315 = pnand %p313, %p314
      %p316 = pneg %p315
      // Predicated region
      $region49: #{tpu_custom_call.1} parent=5 // pred_check
        _
      $region50: #{tpu_custom_call.1} parent=5 // pred_check_branch
        %318 = sbr.rel (%p315) target = $region52
      $region51: #{tpu_custom_call.1} parent=5 // pred_region
        %s319 = ssub.s32 %s18, 1
        %p320 = pneg %p51
        %p321 = pneg %p48
        %s322 = smul.u32 16, %s28
        %p323 = scmp.lt.s32.totalorder %s322, 31
        %s324 = scalar_select %p323, %s322, 31
        %s325 = smul.addr %s324, 8
        %s326 = scalar_lea.vmem %s1, %s325
        %p327 = pneg %p77
        %p328 = pneg %p74
        %s329 = smul.u32 16, %s28
        %p330 = scmp.lt.s32.totalorder %s329, 31
        %s331 = scalar_select %p330, %s329, 31
        %s332 = smul.addr %s331, 8
        %s333 = scalar_lea.vmem %s2, %s332
        %p334 = pneg %p103
        %p335 = pneg %p100
        %p336 = scmp.lt.s32.totalorder %s28, 1
        %s337 = scalar_select %p336, %s28, 1
        %s338 = scalar_lea.vmem %s3, %s337
        %p339 = pneg %p129
        %p340 = pneg %p126
        %p341 = pneg %p150
        %p342 = pneg %p147
        %p343 = pneg %p171
        %p344 = pneg %p168
        %p345 = pneg %p192
        %p346 = pneg %p189
        %p347 = pneg %p213
        %p348 = pneg %p210
        %p349 = pneg %p234
        %p350 = pneg %p231
        %p351 = pneg %p255
        %p352 = pneg %p252
        %s353 = smul.u32 16, %s28
        %p354 = scmp.lt.s32.totalorder %s353, 31
        %s355 = scalar_select %p354, %s353, 31
        %s356 = smul.addr %s355, 8
        %s357 = scalar_lea.vmem %s1, %s356
        %s358 = smul.u32 16, %s28
        %s359 = smul.u32 16, %s28
        %p360 = scmp.lt.s32.totalorder %s359, 31
        %s361 = scalar_select %p360, %s359, 31
        %s362 = smul.addr %s361, 8
        %s363 = scalar_lea.vmem %s2, %s362
        %s364 = smul.u32 16, %s28
        %p365 = scmp.lt.s32.totalorder %s28, 1
        %s366 = scalar_select %p365, %s28, 1
        %s367 = scalar_lea.vmem %s3, %s366
        %p368 = scmp.eq.s32.totalorder %s27, 0
        %p369 = scmp.eq.s32.totalorder %s28, 0
        %p370 = pnand %p368, %p369
        %p371 = pneg %p370
        // Predicated region
        $region53: #{tpu_custom_call.1} parent=51 // pred_check
          _
        $region54: #{tpu_custom_call.1} parent=51 // pred_check_branch
          %373 = sbr.rel (%p370) target = $region56
        $region55: #{tpu_custom_call.1} parent=51 // pred_region
          %374 = vst [vmem:[#allocation7] sm:$0xff] 0.0
          %375 = vst [vmem:[#allocation7 + $0x8] sm:$0xff] 0.0
          %376 = vst [vmem:[#allocation7 + $0x10] sm:$0xff] 0.0
          %377 = vst [vmem:[#allocation7 + $0x18] sm:$0xff] 0.0
          %378 = vst [vmem:[#allocation7 + $0x20] sm:$0xff] 0.0
          %379 = vst [vmem:[#allocation7 + $0x28] sm:$0xff] 0.0
          %380 = vst [vmem:[#allocation7 + $0x30] sm:$0xff] 0.0
          %381 = vst [vmem:[#allocation7 + $0x38] sm:$0xff] 0.0
          %382 = vst [vmem:[#allocation9] sm:$0x3] 0.0
          %383 = vst [vmem:[#allocation2] sm:$0x3] 0.0
          %v384 = vld [vmem:[%s4] sm:$0x3]
          %v385 = vld [vmem:[%s6] sm:$0x1]
          %v386 = vld [vmem:[%s6 + $0x1] sm:$0x1]
          %v387 = vld [vmem:[%s5] sm:$0xff]
          %v388 = vld [vmem:[%s5 + $0x8] sm:$0xff]
          %v389 = vld [vmem:[%s5 + $0x10] sm:$0xff]
          %v390 = vld [vmem:[%s5 + $0x18] sm:$0xff]
          %v391 = vld [vmem:[%s7 + $0x4] sm:$0x1]
          %v392 = vmul.f32 %v384, 0.00390625
          %v393 = vmul.f32 %v392, %v392
          %v395 = vrot.slane %v393, 7
          %v397 = vsub.f32 %v392, %v395
          %v398 = vmax.f32 %v397, 0.0
          %v399 = vadd.f32 %v398, 1e-05
          %v400 = vrsqrt.pop %v399
          %v402 = vrot.slane %v400, 1
          %v404 = vmul.f32 %v385, %v402
          %v405 = vmul.f32 %v392, %v404
          %v406 = vsub.f32 %v386, %v405
          %vm407 = vcmask 261120
          %v409 = vsel %vm407, %v406, 0
          %411 = vmatprep.subr.mxu0 0.0
          %412 = vmatpush1.msra.mxu0 %v387
          %413 = vmatprep.subr.mxu0 0.0
          %414 = vmatpush1.msra.mxu0 %v388
          %415 = vmatprep.subr.mxu0 0.0
          %416 = vmatpush1.msra.mxu0 %v389
          %417 = vmatprep.subr.mxu0 0.0
          %418 = vmatpush1.msra.mxu0 %v390
          %419 = vmatprep.subr.mxu0 0.0
          %420 = vmatpush1.msra.mxu0 0.0
          %421 = vmatprep.subr.mxu0 0.0
          %422 = vmatpush1.msra.mxu0 0.0
          %423 = vmatprep.subr.mxu0 0.0
          %424 = vmatpush1.msra.mxu0 0.0
          %425 = vmatprep.subr.mxu0 0.0
          %426 = vmatpush1.msra.mxu0 0.0
          %427 = vmatprep.subr.mxu0 0.0
          %428 = vmatpush1.msra.mxu0 0.0
          %429 = vmatprep.subr.mxu0 0.0
          %430 = vmatpush1.msra.mxu0 0.0
          %431 = vmatprep.subr.mxu0 0.0
          %432 = vmatpush1.msra.mxu0 0.0
          %433 = vmatprep.subr.mxu0 0.0
          %434 = vmatpush1.msra.mxu0 0.0
          %435 = vmatprep.subr.mxu0 0.0
          %436 = vmatpush1.msra.mxu0 0.0
          %437 = vmatprep.subr.mxu0 0.0
          %438 = vmatpush1.msra.mxu0 0.0
          %439 = vmatprep.subr.mxu0 0.0
          %440 = vmatpush1.msra.mxu0 0.0
          %441 = vmatprep.subr.mxu0 0.0
          %442 = vmatpush1.msra.mxu0 0.0
          %443 = vmatprep.subr.mxu0 0.0
          %444 = vmatpush1.msra.mxu0 0.0
          %445 = vmatprep.subr.mxu0 0.0
          %446 = vmatpush1.msra.mxu0 0.0
          %447 = vmatprep.subr.mxu0 0.0
          %448 = vmatpush1.msra.mxu0 0.0
          %449 = vmatprep.subr.mxu0 0.0
          %450 = vmatpush1.msra.mxu0 0.0
          %451 = vmatprep.subr.mxu0 0.0
          %452 = vmatpush1.msra.mxu0 0.0
          %453 = vmatprep.subr.mxu0 0.0
          %454 = vmatpush1.msra.mxu0 0.0
          %455 = vmatprep.subr.mxu0 0.0
          %456 = vmatpush1.msra.mxu0 0.0
          %457 = vmatprep.subr.mxu0 0.0
          %458 = vmatpush1.msra.mxu0 0.0
          %459 = vmatprep.subr.mxu0 0.0
          %460 = vmatpush1.msra.mxu0 0.0
          %461 = vmatprep.subr.mxu0 0.0
          %462 = vmatpush1.msra.mxu0 0.0
          %463 = vmatprep.subr.mxu0 0.0
          %464 = vmatpush1.msra.mxu0 0.0
          %465 = vmatprep.subr.mxu0 0.0
          %466 = vmatpush1.msra.mxu0 0.0
          %467 = vmatprep.subr.mxu0 0.0
          %468 = vmatpush1.msra.mxu0 0.0
          %469 = vmatprep.subr.mxu0 0.0
          %470 = vmatpush1.msra.mxu0 0.0
          %471 = vmatprep.subr.mxu0 0.0
          %472 = vmatpush1.msra.mxu0 0.0
          %473 = vmatprep.subr.mxu0 0.0
          %474 = vmatpush1.msra.mxu0 0.0
          %475 = vmatprep.mubr.f32.mxu0 0.0
          %476 = vmatmul.mubr.f32.gmra.mrb[0].mxu0 %v409
          %v477 = vpop.f32.mrb[0].mxu0
          %v478 = vadd.f32 0.0, %v477
          %v479 = vpop.f32.mrb[0].mxu0
          %480 = vdwg.mxu0
          %v481 = vadd.f32 %v391, %v478
          %vm482 = vcmask 253952
          %483 = vst.msk [vmem:[#allocation3] sm:$0x1] %vm482, %v404
          %484 = vst [vmem:[#allocation4] sm:$0x1] %v481
        $region56: #{tpu_custom_call.1} parent=51 // pred_fallthru
          _
        %p485 = scmp.eq.s32.totalorder %s27, 1
        %p486 = pnand %p485, %p369
        %p487 = pneg %p486
        // Predicated region
        $region57: #{tpu_custom_call.1} parent=51 // pred_check
          _
        $region58: #{tpu_custom_call.1} parent=51 // pred_check_branch
          %489 = sbr.rel (%p486) target = $region60
        $region59: #{tpu_custom_call.1} parent=51 // pred_region
          %v490 = vld [vmem:[#allocation2] sm:$0x3]
          %v491 = vld [vmem:[%s7] sm:$0x1]
          %v492 = vld [vmem:[%s7 + $0x1] sm:$0x1]
          %v493 = vld [vmem:[%s5 + $0x20] sm:$0xff]
          %v494 = vld [vmem:[%s5 + $0x28] sm:$0xff]
          %v495 = vld [vmem:[%s5 + $0x30] sm:$0xff]
          %v496 = vld [vmem:[%s5 + $0x38] sm:$0xff]
          %v497 = vld [vmem:[%s5 + $0x40] sm:$0xff]
          %v498 = vld [vmem:[%s5 + $0x48] sm:$0xff]
          %v499 = vld [vmem:[%s5 + $0x50] sm:$0xff]
          %v500 = vld [vmem:[%s5 + $0x58] sm:$0xff]
          %v501 = vld [vmem:[%s5 + $0x60] sm:$0xff]
          %v502 = vld [vmem:[%s5 + $0x68] sm:$0xff]
          %v503 = vld [vmem:[%s5 + $0x70] sm:$0xff]
          %v504 = vld [vmem:[%s5 + $0x78] sm:$0xff]
          %v505 = vld [vmem:[%s5 + $0x80] sm:$0xff]
          %v506 = vld [vmem:[%s5 + $0x88] sm:$0xff]
          %v507 = vld [vmem:[%s5 + $0x90] sm:$0xff]
          %v508 = vld [vmem:[%s5 + $0x98] sm:$0xff]
          %v509 = vld [vmem:[%s7 + $0x5] sm:$0x1]
          %v510 = vmul.f32 %v490, 0.00390625
          %v511 = vmul.f32 %v510, %v510
          %v513 = vrot.slane %v511, 7
          %v515 = vsub.f32 %v510, %v513
          %v516 = vmax.f32 %v515, 0.0
          %v517 = vadd.f32 %v516, 1e-05
          %v518 = vrsqrt.pop %v517
          %v520 = vrot.slane %v518, 1
          %v522 = vmul.f32 %v491, %v520
          %v523 = vmul.f32 %v510, %v522
          %v524 = vsub.f32 %v492, %v523
          %525 = vmatprep.subr.mxu0 0.0
          %526 = vmatpush1.msra.mxu0 %v493
          %527 = vmatprep.subr.mxu0 0.0
          %528 = vmatpush1.msra.mxu0 %v494
          %529 = vmatprep.subr.mxu0 0.0
          %530 = vmatpush1.msra.mxu0 %v495
          %531 = vmatprep.subr.mxu0 0.0
          %532 = vmatpush1.msra.mxu0 %v496
          %533 = vmatprep.subr.mxu0 0.0
          %534 = vmatpush1.msra.mxu0 %v497
          %535 = vmatprep.subr.mxu0 0.0
          %536 = vmatpush1.msra.mxu0 %v498
          %537 = vmatprep.subr.mxu0 0.0
          %538 = vmatpush1.msra.mxu0 %v499
          %539 = vmatprep.subr.mxu0 0.0
          %540 = vmatpush1.msra.mxu0 %v500
          %541 = vmatprep.subr.mxu0 0.0
          %542 = vmatpush1.msra.mxu0 %v501
          %543 = vmatprep.subr.mxu0 0.0
          %544 = vmatpush1.msra.mxu0 %v502
          %545 = vmatprep.subr.mxu0 0.0
          %546 = vmatpush1.msra.mxu0 %v503
          %547 = vmatprep.subr.mxu0 0.0
          %548 = vmatpush1.msra.mxu0 %v504
          %549 = vmatprep.subr.mxu0 0.0
          %550 = vmatpush1.msra.mxu0 %v505
          %551 = vmatprep.subr.mxu0 0.0
          %552 = vmatpush1.msra.mxu0 %v506
          %553 = vmatprep.subr.mxu0 0.0
          %554 = vmatpush1.msra.mxu0 %v507
          %555 = vmatprep.subr.mxu0 0.0
          %556 = vmatpush1.msra.mxu0 %v508
          %557 = vmatprep.subr.mxu0 0.0
          %558 = vmatpush1.msra.mxu0 0.0
          %559 = vmatprep.subr.mxu0 0.0
          %560 = vmatpush1.msra.mxu0 0.0
          %561 = vmatprep.subr.mxu0 0.0
          %562 = vmatpush1.msra.mxu0 0.0
          %563 = vmatprep.subr.mxu0 0.0
          %564 = vmatpush1.msra.mxu0 0.0
          %565 = vmatprep.subr.mxu0 0.0
          %566 = vmatpush1.msra.mxu0 0.0
          %567 = vmatprep.subr.mxu0 0.0
          %568 = vmatpush1.msra.mxu0 0.0
          %569 = vmatprep.subr.mxu0 0.0
          %570 = vmatpush1.msra.mxu0 0.0
          %571 = vmatprep.subr.mxu0 0.0
          %572 = vmatpush1.msra.mxu0 0.0
          %573 = vmatprep.subr.mxu0 0.0
          %574 = vmatpush1.msra.mxu0 0.0
          %575 = vmatprep.subr.mxu0 0.0
          %576 = vmatpush1.msra.mxu0 0.0
          %577 = vmatprep.subr.mxu0 0.0
          %578 = vmatpush1.msra.mxu0 0.0
          %579 = vmatprep.subr.mxu0 0.0
          %580 = vmatpush1.msra.mxu0 0.0
          %581 = vmatprep.subr.mxu0 0.0
          %582 = vmatpush1.msra.mxu0 0.0
          %583 = vmatprep.subr.mxu0 0.0
          %584 = vmatpush1.msra.mxu0 0.0
          %585 = vmatprep.subr.mxu0 0.0
          %586 = vmatpush1.msra.mxu0 0.0
          %587 = vmatprep.subr.mxu0 0.0
          %588 = vmatpush1.msra.mxu0 0.0
          %589 = vmatprep.mubr.f32.mxu0 0.0
          %590 = vmatmul.mubr.f32.gmra.mrb[0].mxu0 %v524
          %v591 = vpop.f32.mrb[0].mxu0
          %v592 = vadd.f32 0.0, %v591
          %v593 = vpop.f32.mrb[0].mxu0
          %594 = vdwg.mxu0
          %v595 = vadd.f32 %v509, %v592
          %596 = vst [vmem:[#allocation5] sm:$0x1] %v522
          %597 = vst [vmem:[#allocation6] sm:$0x1] %v595
        $region60: #{tpu_custom_call.1} parent=51 // pred_fallthru
          _
        %v598 = vld [vmem:[%s363] sm:$0xff]
        %v599 = vld [vmem:[%s363 + $0x8] sm:$0xff]
        %v600 = vld [vmem:[%s363 + $0x10] sm:$0xff]
        %v601 = vld [vmem:[%s363 + $0x18] sm:$0xff]
        %v602 = vld [vmem:[%s363 + $0x20] sm:$0xff]
        %v603 = vld [vmem:[%s363 + $0x28] sm:$0xff]
        %v604 = vld [vmem:[%s363 + $0x30] sm:$0xff]
        %v605 = vld [vmem:[%s363 + $0x38] sm:$0xff]
        %v606 = vld [vmem:[%s363 + $0x40] sm:$0xff]
        %v607 = vld [vmem:[%s363 + $0x48] sm:$0xff]
        %v608 = vld [vmem:[%s363 + $0x50] sm:$0xff]
        %v609 = vld [vmem:[%s363 + $0x58] sm:$0xff]
        %v610 = vld [vmem:[%s363 + $0x60] sm:$0xff]
        %v611 = vld [vmem:[%s363 + $0x68] sm:$0xff]
        %v612 = vld [vmem:[%s363 + $0x70] sm:$0xff]
        %v613 = vld [vmem:[%s363 + $0x78] sm:$0xff]
        %v614 = vlaneseq
        %v615 = vand.u32 %v614, 127
        %616 = vset.pattern.permute.xlu0 0
        %617 = vperm.xlu0 %616, %v598
        %v618 = vpop.permute.xlu0 %617
        %619 = vset.pattern.permute.xlu0 0
        %620 = vperm.xlu0 %619, %v599
        %v621 = vpop.permute.xlu0 %620
        %622 = vset.pattern.permute.xlu0 0
        %623 = vperm.xlu0 %622, %v600
        %v624 = vpop.permute.xlu0 %623
        %625 = vset.pattern.permute.xlu0 0
        %626 = vperm.xlu0 %625, %v601
        %v627 = vpop.permute.xlu0 %626
        %628 = vset.pattern.permute.xlu0 0
        %629 = vperm.xlu0 %628, %v602
        %v630 = vpop.permute.xlu0 %629
        %631 = vset.pattern.permute.xlu0 0
        %632 = vperm.xlu0 %631, %v603
        %v633 = vpop.permute.xlu0 %632
        %634 = vset.pattern.permute.xlu0 0
        %635 = vperm.xlu0 %634, %v604
        %v636 = vpop.permute.xlu0 %635
        %637 = vset.pattern.permute.xlu0 0
        %638 = vperm.xlu0 %637, %v605
        %v639 = vpop.permute.xlu0 %638
        %640 = vset.pattern.permute.xlu0 0
        %641 = vperm.xlu0 %640, %v606
        %v642 = vpop.permute.xlu0 %641
        %643 = vset.pattern.permute.xlu0 0
        %644 = vperm.xlu0 %643, %v607
        %v645 = vpop.permute.xlu0 %644
        %646 = vset.pattern.permute.xlu0 0
        %647 = vperm.xlu0 %646, %v608
        %v648 = vpop.permute.xlu0 %647
        %649 = vset.pattern.permute.xlu0 0
        %650 = vperm.xlu0 %649, %v609
        %v651 = vpop.permute.xlu0 %650
        %652 = vset.pattern.permute.xlu0 0
        %653 = vperm.xlu0 %652, %v610
        %v654 = vpop.permute.xlu0 %653
        %655 = vset.pattern.permute.xlu0 0
        %656 = vperm.xlu0 %655, %v611
        %v657 = vpop.permute.xlu0 %656
        %658 = vset.pattern.permute.xlu0 0
        %659 = vperm.xlu0 %658, %v612
        %v660 = vpop.permute.xlu0 %659
        %661 = vset.pattern.permute.xlu0 0
        %662 = vperm.xlu0 %661, %v613
        %v663 = vpop.permute.xlu0 %662
        %vm664 = vcmp.eq.s32.totalorder %v615, %v618
        %vm665 = vcmp.eq.s32.totalorder %v615, %v621
        %vm666 = vcmp.eq.s32.totalorder %v615, %v624
        %vm667 = vcmp.eq.s32.totalorder %v615, %v627
        %vm668 = vcmp.eq.s32.totalorder %v615, %v630
        %vm669 = vcmp.eq.s32.totalorder %v615, %v633
        %vm670 = vcmp.eq.s32.totalorder %v615, %v636
        %vm671 = vcmp.eq.s32.totalorder %v615, %v639
        %vm672 = vcmp.eq.s32.totalorder %v615, %v642
        %vm673 = vcmp.eq.s32.totalorder %v615, %v645
        %vm674 = vcmp.eq.s32.totalorder %v615, %v648
        %vm675 = vcmp.eq.s32.totalorder %v615, %v651
        %vm676 = vcmp.eq.s32.totalorder %v615, %v654
        %vm677 = vcmp.eq.s32.totalorder %v615, %v657
        %vm678 = vcmp.eq.s32.totalorder %v615, %v660
        %vm679 = vcmp.eq.s32.totalorder %v615, %v663
        %v680 = vsel %vm664, 1, 0
        %v681 = vsel %vm665, 1, 0
        %v682 = vsel %vm666, 1, 0
        %v683 = vsel %vm667, 1, 0
        %v684 = vsel %vm668, 1, 0
        %v685 = vsel %vm669, 1, 0
        %v686 = vsel %vm670, 1, 0
        %v687 = vsel %vm671, 1, 0
        %v688 = vsel %vm672, 1, 0
        %v689 = vsel %vm673, 1, 0
        %v690 = vsel %vm674, 1, 0
        %v691 = vsel %vm675, 1, 0
        %v692 = vsel %vm676, 1, 0
        %v693 = vsel %vm677, 1, 0
        %v694 = vsel %vm678, 1, 0
        %v695 = vsel %vm679, 1, 0
        %v696 = vcvt.s32.f32 %v680
        %v697 = vcvt.s32.f32 %v681
        %v698 = vcvt.s32.f32 %v682
        %v699 = vcvt.s32.f32 %v683
        %v700 = vcvt.s32.f32 %v684
        %v701 = vcvt.s32.f32 %v685
        %v702 = vcvt.s32.f32 %v686
        %v703 = vcvt.s32.f32 %v687
        %v704 = vcvt.s32.f32 %v688
        %v705 = vcvt.s32.f32 %v689
        %v706 = vcvt.s32.f32 %v690
        %v707 = vcvt.s32.f32 %v691
        %v708 = vcvt.s32.f32 %v692
        %v709 = vcvt.s32.f32 %v693
        %v710 = vcvt.s32.f32 %v694
        %v711 = vcvt.s32.f32 %v695
        %v712 = vld [vmem:[%s0] sm:$0xff]
        %v713 = vld [vmem:[%s0 + $0x8] sm:$0xff]
        %v714 = vld [vmem:[%s0 + $0x10] sm:$0xff]
        %v715 = vld [vmem:[%s0 + $0x18] sm:$0xff]
        %v716 = vld [vmem:[%s0 + $0x20] sm:$0xff]
        %v717 = vld [vmem:[%s0 + $0x28] sm:$0xff]
        %v718 = vld [vmem:[%s0 + $0x30] sm:$0xff]
        %v719 = vld [vmem:[%s0 + $0x38] sm:$0xff]
        %vm720 = vcmask 523264
        %v722 = vsel %vm720, %v696, 0
        %v725 = vsel %vm720, %v697, 0
        %v728 = vsel %vm720, %v698, 0
        %v731 = vsel %vm720, %v699, 0
        %v734 = vsel %vm720, %v700, 0
        %v737 = vsel %vm720, %v701, 0
        %v740 = vsel %vm720, %v702, 0
        %v743 = vsel %vm720, %v703, 0
        %v746 = vsel %vm720, %v704, 0
        %v749 = vsel %vm720, %v705, 0
        %v752 = vsel %vm720, %v706, 0
        %v755 = vsel %vm720, %v707, 0
        %v758 = vsel %vm720, %v708, 0
        %v761 = vsel %vm720, %v709, 0
        %v764 = vsel %vm720, %v710, 0
        %v767 = vsel %vm720, %v711, 0
        %769 = vmatprep.subr.mxu0 0.0
        %770 = vmatpush1.msra.mxu0 %v712
        %771 = vmatprep.subr.mxu0 0.0
        %772 = vmatpush1.msra.mxu0 %v713
        %773 = vmatprep.subr.mxu0 0.0
        %774 = vmatpush1.msra.mxu0 %v714
        %775 = vmatprep.subr.mxu0 0.0
        %776 = vmatpush1.msra.mxu0 %v715
        %777 = vmatprep.subr.mxu0 0.0
        %778 = vmatpush1.msra.mxu0 %v716
        %779 = vmatprep.subr.mxu0 0.0
        %780 = vmatpush1.msra.mxu0 %v717
        %781 = vmatprep.subr.mxu0 0.0
        %782 = vmatpush1.msra.mxu0 %v718
        %783 = vmatprep.subr.mxu0 0.0
        %784 = vmatpush1.msra.mxu0 %v719
        %785 = vmatprep.subr.mxu0 0.0
        %786 = vmatpush1.msra.mxu0 0.0
        %787 = vmatprep.subr.mxu0 0.0
        %788 = vmatpush1.msra.mxu0 0.0
        %789 = vmatprep.subr.mxu0 0.0
        %790 = vmatpush1.msra.mxu0 0.0
        %791 = vmatprep.subr.mxu0 0.0
        %792 = vmatpush1.msra.mxu0 0.0
        %793 = vmatprep.subr.mxu0 0.0
        %794 = vmatpush1.msra.mxu0 0.0
        %795 = vmatprep.subr.mxu0 0.0
        %796 = vmatpush1.msra.mxu0 0.0
        %797 = vmatprep.subr.mxu0 0.0
        %798 = vmatpush1.msra.mxu0 0.0
        %799 = vmatprep.subr.mxu0 0.0
        %800 = vmatpush1.msra.mxu0 0.0
        %801 = vmatprep.subr.mxu0 0.0
        %802 = vmatpush1.msra.mxu0 0.0
        %803 = vmatprep.subr.mxu0 0.0
        %804 = vmatpush1.msra.mxu0 0.0
        %805 = vmatprep.subr.mxu0 0.0
        %806 = vmatpush1.msra.mxu0 0.0
        %807 = vmatprep.subr.mxu0 0.0
        %808 = vmatpush1.msra.mxu0 0.0
        %809 = vmatprep.subr.mxu0 0.0
        %810 = vmatpush1.msra.mxu0 0.0
        %811 = vmatprep.subr.mxu0 0.0
        %812 = vmatpush1.msra.mxu0 0.0
        %813 = vmatprep.subr.mxu0 0.0
        %814 = vmatpush1.msra.mxu0 0.0
        %815 = vmatprep.subr.mxu0 0.0
        %816 = vmatpush1.msra.mxu0 0.0
        %817 = vmatprep.subr.mxu0 0.0
        %818 = vmatpush1.msra.mxu0 0.0
        %819 = vmatprep.subr.mxu0 0.0
        %820 = vmatpush1.msra.mxu0 0.0
        %821 = vmatprep.subr.mxu0 0.0
        %822 = vmatpush1.msra.mxu0 0.0
        %823 = vmatprep.subr.mxu0 0.0
        %824 = vmatpush1.msra.mxu0 0.0
        %825 = vmatprep.subr.mxu0 0.0
        %826 = vmatpush1.msra.mxu0 0.0
        %827 = vmatprep.subr.mxu0 0.0
        %828 = vmatpush1.msra.mxu0 0.0
        %829 = vmatprep.subr.mxu0 0.0
        %830 = vmatpush1.msra.mxu0 0.0
        %831 = vmatprep.subr.mxu0 0.0
        %832 = vmatpush1.msra.mxu0 0.0
        %833 = vmatprep.mubr.f32.mxu0 0.0
        %834 = vmatmul.mubr.f32.gmra.mrb[0].mxu0 %v722
        %v835 = vpop.f32.mrb[0].mxu0
        %v836 = vadd.f32 0.0, %v835
        %v837 = vpop.f32.mrb[0].mxu0
        %838 = vmatprep.mubr.f32.mxu0 0.0
        %839 = vmatmul.mubr.f32.gmra.mrb[0].mxu0 %v725
        %v840 = vpop.f32.mrb[0].mxu0
        %v841 = vadd.f32 0.0, %v840
        %v842 = vpop.f32.mrb[0].mxu0
        %843 = vmatprep.mubr.f32.mxu0 0.0
        %844 = vmatmul.mubr.f32.gmra.mrb[0].mxu0 %v728
        %v845 = vpop.f32.mrb[0].mxu0
        %v846 = vadd.f32 0.0, %v845
        %v847 = vpop.f32.mrb[0].mxu0
        %848 = vmatprep.mubr.f32.mxu0 0.0
        %849 = vmatmul.mubr.f32.gmra.mrb[0].mxu0 %v731
        %v850 = vpop.f32.mrb[0].mxu0
        %v851 = vadd.f32 0.0, %v850
        %v852 = vpop.f32.mrb[0].mxu0
        %853 = vmatprep.mubr.f32.mxu0 0.0
        %854 = vmatmul.mubr.f32.gmra.mrb[0].mxu0 %v734
        %v855 = vpop.f32.mrb[0].mxu0
        %v856 = vadd.f32 0.0, %v855
        %v857 = vpop.f32.mrb[0].mxu0
        %858 = vmatprep.mubr.f32.mxu0 0.0
        %859 = vmatmul.mubr.f32.gmra.mrb[0].mxu0 %v737
        %v860 = vpop.f32.mrb[0].mxu0
        %v861 = vadd.f32 0.0, %v860
        %v862 = vpop.f32.mrb[0].mxu0
        %863 = vmatprep.mubr.f32.mxu0 0.0
        %864 = vmatmul.mubr.f32.gmra.mrb[0].mxu0 %v740
        %v865 = vpop.f32.mrb[0].mxu0
        %v866 = vadd.f32 0.0, %v865
        %v867 = vpop.f32.mrb[0].mxu0
        %868 = vmatprep.mubr.f32.mxu0 0.0
        %869 = vmatmul.mubr.f32.gmra.mrb[0].mxu0 %v743
        %v870 = vpop.f32.mrb[0].mxu0
        %v871 = vadd.f32 0.0, %v870
        %v872 = vpop.f32.mrb[0].mxu0
        %873 = vmatprep.mubr.f32.mxu0 0.0
        %874 = vmatmul.mubr.f32.gmra.mrb[0].mxu0 %v746
        %v875 = vpop.f32.mrb[0].mxu0
        %v876 = vadd.f32 0.0, %v875
        %v877 = vpop.f32.mrb[0].mxu0
        %878 = vmatprep.mubr.f32.mxu0 0.0
        %879 = vmatmul.mubr.f32.gmra.mrb[0].mxu0 %v749
        %v880 = vpop.f32.mrb[0].mxu0
        %v881 = vadd.f32 0.0, %v880
        %v882 = vpop.f32.mrb[0].mxu0
        %883 = vmatprep.mubr.f32.mxu0 0.0
        %884 = vmatmul.mubr.f32.gmra.mrb[0].mxu0 %v752
        %v885 = vpop.f32.mrb[0].mxu0
        %v886 = vadd.f32 0.0, %v885
        %v887 = vpop.f32.mrb[0].mxu0
        %888 = vmatprep.mubr.f32.mxu0 0.0
        %889 = vmatmul.mubr.f32.gmra.mrb[0].mxu0 %v755
        %v890 = vpop.f32.mrb[0].mxu0
        %v891 = vadd.f32 0.0, %v890
        %v892 = vpop.f32.mrb[0].mxu0
        %893 = vmatprep.mubr.f32.mxu0 0.0
        %894 = vmatmul.mubr.f32.gmra.mrb[0].mxu0 %v758
        %v895 = vpop.f32.mrb[0].mxu0
        %v896 = vadd.f32 0.0, %v895
        %v897 = vpop.f32.mrb[0].mxu0
        %898 = vmatprep.mubr.f32.mxu0 0.0
        %899 = vmatmul.mubr.f32.gmra.mrb[0].mxu0 %v761
        %v900 = vpop.f32.mrb[0].mxu0
        %v901 = vadd.f32 0.0, %v900
        %v902 = vpop.f32.mrb[0].mxu0
        %903 = vmatprep.mubr.f32.mxu0 0.0
        %904 = vmatmul.mubr.f32.gmra.mrb[0].mxu0 %v764
        %v905 = vpop.f32.mrb[0].mxu0
        %v906 = vadd.f32 0.0, %v905
        %v907 = vpop.f32.mrb[0].mxu0
        %908 = vmatprep.mubr.f32.mxu0 0.0
        %909 = vmatmul.mubr.f32.gmra.mrb[0].mxu0 %v767
        %v910 = vpop.f32.mrb[0].mxu0
        %v911 = vadd.f32 0.0, %v910
        %v912 = vpop.f32.mrb[0].mxu0
        %913 = vdwg.mxu0
        %v914 = vld [vmem:[%s357] sm:$0xff]
        %v915 = vld [vmem:[%s357 + $0x8] sm:$0xff]
        %v916 = vld [vmem:[%s357 + $0x10] sm:$0xff]
        %v917 = vld [vmem:[%s357 + $0x18] sm:$0xff]
        %v918 = vld [vmem:[%s357 + $0x20] sm:$0xff]
        %v919 = vld [vmem:[%s357 + $0x28] sm:$0xff]
        %v920 = vld [vmem:[%s357 + $0x30] sm:$0xff]
        %v921 = vld [vmem:[%s357 + $0x38] sm:$0xff]
        %v922 = vld [vmem:[%s357 + $0x40] sm:$0xff]
        %v923 = vld [vmem:[%s357 + $0x48] sm:$0xff]
        %v924 = vld [vmem:[%s357 + $0x50] sm:$0xff]
        %v925 = vld [vmem:[%s357 + $0x58] sm:$0xff]
        %v926 = vld [vmem:[%s357 + $0x60] sm:$0xff]
        %v927 = vld [vmem:[%s357 + $0x68] sm:$0xff]
        %v928 = vld [vmem:[%s357 + $0x70] sm:$0xff]
        %v929 = vld [vmem:[%s357 + $0x78] sm:$0xff]
        %946 = vrot.lane.b32.xlu0 %v914, 16
        %v947 = vpop.permute.xlu0 %946
        %948 = vrot.lane.b32.xlu0 %v915, 16
        %v949 = vpop.permute.xlu0 %948
        %950 = vrot.lane.b32.xlu0 %v916, 16
        %v951 = vpop.permute.xlu0 %950
        %952 = vrot.lane.b32.xlu0 %v917, 16
        %v953 = vpop.permute.xlu0 %952
        %954 = vrot.lane.b32.xlu0 %v918, 16
        %v955 = vpop.permute.xlu0 %954
        %956 = vrot.lane.b32.xlu0 %v919, 16
        %v957 = vpop.permute.xlu0 %956
        %958 = vrot.lane.b32.xlu0 %v920, 16
        %v959 = vpop.permute.xlu0 %958
        %960 = vrot.lane.b32.xlu0 %v921, 16
        %v961 = vpop.permute.xlu0 %960
        %962 = vrot.lane.b32.xlu0 %v922, 16
        %v963 = vpop.permute.xlu0 %962
        %964 = vrot.lane.b32.xlu0 %v923, 16
        %v965 = vpop.permute.xlu0 %964
        %966 = vrot.lane.b32.xlu0 %v924, 16
        %v967 = vpop.permute.xlu0 %966
        %968 = vrot.lane.b32.xlu0 %v925, 16
        %v969 = vpop.permute.xlu0 %968
        %970 = vrot.lane.b32.xlu0 %v926, 16
        %v971 = vpop.permute.xlu0 %970
        %972 = vrot.lane.b32.xlu0 %v927, 16
        %v973 = vpop.permute.xlu0 %972
        %974 = vrot.lane.b32.xlu0 %v928, 16
        %v975 = vpop.permute.xlu0 %974
        %976 = vrot.lane.b32.xlu0 %v929, 16
        %v977 = vpop.permute.xlu0 %976
        %vm994 = vcmask 130048
        %v995 = vsel %vm994, %v836, %v947
        %v996 = vsel %vm994, %v841, %v949
        %v997 = vsel %vm994, %v846, %v951
        %v998 = vsel %vm994, %v851, %v953
        %v999 = vsel %vm994, %v856, %v955
        %v1000 = vsel %vm994, %v861, %v957
        %v1001 = vsel %vm994, %v866, %v959
        %v1002 = vsel %vm994, %v871, %v961
        %v1003 = vsel %vm994, %v876, %v963
        %v1004 = vsel %vm994, %v881, %v965
        %v1005 = vsel %vm994, %v886, %v967
        %v1006 = vsel %vm994, %v891, %v969
        %v1007 = vsel %vm994, %v896, %v971
        %v1008 = vsel %vm994, %v901, %v973
        %v1009 = vsel %vm994, %v906, %v975
        %v1010 = vsel %vm994, %v911, %v977
        %s1011 = smul.u32 %s28, 128
        %v1012 = vlaneseq
        %v1013 = vshrl.u32 %v1012, 7
        %v1014 = vadd.s32 %v1013, 8
        %v1015 = vadd.s32 %v1013, 16
        %v1016 = vadd.s32 %v1013, 24
        %v1017 = vadd.s32 %v1013, 32
        %v1018 = vadd.s32 %v1013, 40
        %v1019 = vadd.s32 %v1013, 48
        %v1020 = vadd.s32 %v1013, 56
        %v1021 = vadd.s32 %v1013, 64
        %v1022 = vadd.s32 %v1013, 72
        %v1023 = vadd.s32 %v1013, 80
        %v1024 = vadd.s32 %v1013, 88
        %v1025 = vadd.s32 %v1013, 96
        %v1026 = vadd.s32 %v1013, 104
        %v1027 = vadd.s32 %v1013, 112
        %v1028 = vadd.s32 %v1013, 120
        %v1029 = vstv %s1011
        %v1030 = vadd.s32 %v1029, %v1013
        %v1031 = vadd.s32 %v1029, %v1014
        %v1032 = vadd.s32 %v1029, %v1015
        %v1033 = vadd.s32 %v1029, %v1016
        %v1034 = vadd.s32 %v1029, %v1017
        %v1035 = vadd.s32 %v1029, %v1018
        %v1036 = vadd.s32 %v1029, %v1019
        %v1037 = vadd.s32 %v1029, %v1020
        %v1038 = vadd.s32 %v1029, %v1021
        %v1039 = vadd.s32 %v1029, %v1022
        %v1040 = vadd.s32 %v1029, %v1023
        %v1041 = vadd.s32 %v1029, %v1024
        %v1042 = vadd.s32 %v1029, %v1025
        %v1043 = vadd.s32 %v1029, %v1026
        %v1044 = vadd.s32 %v1029, %v1027
        %v1045 = vadd.s32 %v1029, %v1028
        %vm1046 = vcmp.lt.s32.totalorder %v1030, 256
        %vm1047 = vcmp.lt.s32.totalorder %v1031, 256
        %vm1048 = vcmp.lt.s32.totalorder %v1032, 256
        %vm1049 = vcmp.lt.s32.totalorder %v1033, 256
        %vm1050 = vcmp.lt.s32.totalorder %v1034, 256
        %vm1051 = vcmp.lt.s32.totalorder %v1035, 256
        %vm1052 = vcmp.lt.s32.totalorder %v1036, 256
        %vm1053 = vcmp.lt.s32.totalorder %v1037, 256
        %vm1054 = vcmp.lt.s32.totalorder %v1038, 256
        %vm1055 = vcmp.lt.s32.totalorder %v1039, 256
        %vm1056 = vcmp.lt.s32.totalorder %v1040, 256
        %vm1057 = vcmp.lt.s32.totalorder %v1041, 256
        %vm1058 = vcmp.lt.s32.totalorder %v1042, 256
        %vm1059 = vcmp.lt.s32.totalorder %v1043, 256
        %vm1060 = vcmp.lt.s32.totalorder %v1044, 256
        %vm1061 = vcmp.lt.s32.totalorder %v1045, 256
        %v1062 = vsel %vm1046, 1, 0
        %v1063 = vsel %vm1047, 1, 0
        %v1064 = vsel %vm1048, 1, 0
        %v1065 = vsel %vm1049, 1, 0
        %v1066 = vsel %vm1050, 1, 0
        %v1067 = vsel %vm1051, 1, 0
        %v1068 = vsel %vm1052, 1, 0
        %v1069 = vsel %vm1053, 1, 0
        %v1070 = vsel %vm1054, 1, 0
        %v1071 = vsel %vm1055, 1, 0
        %v1072 = vsel %vm1056, 1, 0
        %v1073 = vsel %vm1057, 1, 0
        %v1074 = vsel %vm1058, 1, 0
        %v1075 = vsel %vm1059, 1, 0
        %v1076 = vsel %vm1060, 1, 0
        %v1077 = vsel %vm1061, 1, 0
        %v1078 = vcvt.s32.f32 %v1062
        %v1079 = vcvt.s32.f32 %v1063
        %v1080 = vcvt.s32.f32 %v1064
        %v1081 = vcvt.s32.f32 %v1065
        %v1082 = vcvt.s32.f32 %v1066
        %v1083 = vcvt.s32.f32 %v1067
        %v1084 = vcvt.s32.f32 %v1068
        %v1085 = vcvt.s32.f32 %v1069
        %v1086 = vcvt.s32.f32 %v1070
        %v1087 = vcvt.s32.f32 %v1071
        %v1088 = vcvt.s32.f32 %v1072
        %v1089 = vcvt.s32.f32 %v1073
        %v1090 = vcvt.s32.f32 %v1074
        %v1091 = vcvt.s32.f32 %v1075
        %v1092 = vcvt.s32.f32 %v1076
        %v1093 = vcvt.s32.f32 %v1077
        %v1094 = vld [vmem:[#allocation3] sm:$0x1]
        %v1096 = vlaneseq
        %v1097 = vshrl.u32 %v1096, 7
        %v1098 = vsub.s32 0, %v1097
        %v1099 = vrot.slane %v1094, %v1098
        %v1101 = vmul.f32 %v995, %v1099
        %v1102 = vmul.f32 %v996, %v1099
        %v1103 = vmul.f32 %v997, %v1099
        %v1104 = vmul.f32 %v998, %v1099
        %v1105 = vmul.f32 %v999, %v1099
        %v1106 = vmul.f32 %v1000, %v1099
        %v1107 = vmul.f32 %v1001, %v1099
        %v1108 = vmul.f32 %v1002, %v1099
        %v1109 = vmul.f32 %v1003, %v1099
        %v1110 = vmul.f32 %v1004, %v1099
        %v1111 = vmul.f32 %v1005, %v1099
        %v1112 = vmul.f32 %v1006, %v1099
        %v1113 = vmul.f32 %v1007, %v1099
        %v1114 = vmul.f32 %v1008, %v1099
        %v1115 = vmul.f32 %v1009, %v1099
        %v1116 = vmul.f32 %v1010, %v1099
        %v1117 = vld [vmem:[%s5] sm:$0xff]
        %v1118 = vld [vmem:[%s5 + $0x8] sm:$0xff]
        %v1119 = vld [vmem:[%s5 + $0x10] sm:$0xff]
        %v1120 = vld [vmem:[%s5 + $0x18] sm:$0xff]
        %v1121 = vld [vmem:[#allocation4] sm:$0x1]
        %v1123 = vlaneseq
        %v1124 = vshrl.u32 %v1123, 7
        %v1125 = vsub.s32 0, %v1124
        %v1126 = vrot.slane %v1121, %v1125
        %vm1128 = vcmask 261120
        %v1130 = vsel %vm1128, %v1101, 0
        %v1133 = vsel %vm1128, %v1102, 0
        %v1136 = vsel %vm1128, %v1103, 0
        %v1139 = vsel %vm1128, %v1104, 0
        %v1142 = vsel %vm1128, %v1105, 0
        %v1145 = vsel %vm1128, %v1106, 0
        %v1148 = vsel %vm1128, %v1107, 0
        %v1151 = vsel %vm1128, %v1108, 0
        %v1154 = vsel %vm1128, %v1109, 0
        %v1157 = vsel %vm1128, %v1110, 0
        %v1160 = vsel %vm1128, %v1111, 0
        %v1163 = vsel %vm1128, %v1112, 0
        %v1166 = vsel %vm1128, %v1113, 0
        %v1169 = vsel %vm1128, %v1114, 0
        %v1172 = vsel %vm1128, %v1115, 0
        %v1175 = vsel %vm1128, %v1116, 0
        %1177 = vmatprep.subr.mxu0 0.0
        %1178 = vmatpush1.msra.mxu0 %v1117
        %1179 = vmatprep.subr.mxu0 0.0
        %1180 = vmatpush1.msra.mxu0 %v1118
        %1181 = vmatprep.subr.mxu0 0.0
        %1182 = vmatpush1.msra.mxu0 %v1119
        %1183 = vmatprep.subr.mxu0 0.0
        %1184 = vmatpush1.msra.mxu0 %v1120
        %1185 = vmatprep.subr.mxu0 0.0
        %1186 = vmatpush1.msra.mxu0 0.0
        %1187 = vmatprep.subr.mxu0 0.0
        %1188 = vmatpush1.msra.mxu0 0.0
        %1189 = vmatprep.subr.mxu0 0.0
        %1190 = vmatpush1.msra.mxu0 0.0
        %1191 = vmatprep.subr.mxu0 0.0
        %1192 = vmatpush1.msra.mxu0 0.0
        %1193 = vmatprep.subr.mxu0 0.0
        %1194 = vmatpush1.msra.mxu0 0.0
        %1195 = vmatprep.subr.mxu0 0.0
        %1196 = vmatpush1.msra.mxu0 0.0
        %1197 = vmatprep.subr.mxu0 0.0
        %1198 = vmatpush1.msra.mxu0 0.0
        %1199 = vmatprep.subr.mxu0 0.0
        %1200 = vmatpush1.msra.mxu0 0.0
        %1201 = vmatprep.subr.mxu0 0.0
        %1202 = vmatpush1.msra.mxu0 0.0
        %1203 = vmatprep.subr.mxu0 0.0
        %1204 = vmatpush1.msra.mxu0 0.0
        %1205 = vmatprep.subr.mxu0 0.0
        %1206 = vmatpush1.msra.mxu0 0.0
        %1207 = vmatprep.subr.mxu0 0.0
        %1208 = vmatpush1.msra.mxu0 0.0
        %1209 = vmatprep.subr.mxu0 0.0
        %1210 = vmatpush1.msra.mxu0 0.0
        %1211 = vmatprep.subr.mxu0 0.0
        %1212 = vmatpush1.msra.mxu0 0.0
        %1213 = vmatprep.subr.mxu0 0.0
        %1214 = vmatpush1.msra.mxu0 0.0
        %1215 = vmatprep.subr.mxu0 0.0
        %1216 = vmatpush1.msra.mxu0 0.0
        %1217 = vmatprep.subr.mxu0 0.0
        %1218 = vmatpush1.msra.mxu0 0.0
        %1219 = vmatprep.subr.mxu0 0.0
        %1220 = vmatpush1.msra.mxu0 0.0
        %1221 = vmatprep.subr.mxu0 0.0
        %1222 = vmatpush1.msra.mxu0 0.0
        %1223 = vmatprep.subr.mxu0 0.0
        %1224 = vmatpush1.msra.mxu0 0.0
        %1225 = vmatprep.subr.mxu0 0.0
        %1226 = vmatpush1.msra.mxu0 0.0
        %1227 = vmatprep.subr.mxu0 0.0
        %1228 = vmatpush1.msra.mxu0 0.0
        %1229 = vmatprep.subr.mxu0 0.0
        %1230 = vmatpush1.msra.mxu0 0.0
        %1231 = vmatprep.subr.mxu0 0.0
        %1232 = vmatpush1.msra.mxu0 0.0
        %1233 = vmatprep.subr.mxu0 0.0
        %1234 = vmatpush1.msra.mxu0 0.0
        %1235 = vmatprep.subr.mxu0 0.0
        %1236 = vmatpush1.msra.mxu0 0.0
        %1237 = vmatprep.subr.mxu0 0.0
        %1238 = vmatpush1.msra.mxu0 0.0
        %1239 = vmatprep.subr.mxu0 0.0
        %1240 = vmatpush1.msra.mxu0 0.0
        %1241 = vmatprep.mubr.f32.mxu0 0.0
        %1242 = vmatmul.mubr.f32.gmra.mrb[0].mxu0 %v1130
        %v1243 = vpop.f32.mrb[0].mxu0
        %v1244 = vadd.f32 %v1126, %v1243
        %v1245 = vpop.f32.mrb[0].mxu0
        %1246 = vmatprep.mubr.f32.mxu0 0.0
        %1247 = vmatmul.mubr.f32.gmra.mrb[0].mxu0 %v1133
        %v1248 = vpop.f32.mrb[0].mxu0
        %v1249 = vadd.f32 %v1126, %v1248
        %v1250 = vpop.f32.mrb[0].mxu0
        %1251 = vmatprep.mubr.f32.mxu0 0.0
        %1252 = vmatmul.mubr.f32.gmra.mrb[0].mxu0 %v1136
        %v1253 = vpop.f32.mrb[0].mxu0
        %v1254 = vadd.f32 %v1126, %v1253
        %v1255 = vpop.f32.mrb[0].mxu0
        %1256 = vmatprep.mubr.f32.mxu0 0.0
        %1257 = vmatmul.mubr.f32.gmra.mrb[0].mxu0 %v1139
        %v1258 = vpop.f32.mrb[0].mxu0
        %v1259 = vadd.f32 %v1126, %v1258
        %v1260 = vpop.f32.mrb[0].mxu0
        %1261 = vmatprep.mubr.f32.mxu0 0.0
        %1262 = vmatmul.mubr.f32.gmra.mrb[0].mxu0 %v1142
        %v1263 = vpop.f32.mrb[0].mxu0
        %v1264 = vadd.f32 %v1126, %v1263
        %v1265 = vpop.f32.mrb[0].mxu0
        %1266 = vmatprep.mubr.f32.mxu0 0.0
        %1267 = vmatmul.mubr.f32.gmra.mrb[0].mxu0 %v1145
        %v1268 = vpop.f32.mrb[0].mxu0
        %v1269 = vadd.f32 %v1126, %v1268
        %v1270 = vpop.f32.mrb[0].mxu0
        %1271 = vmatprep.mubr.f32.mxu0 0.0
        %1272 = vmatmul.mubr.f32.gmra.mrb[0].mxu0 %v1148
        %v1273 = vpop.f32.mrb[0].mxu0
        %v1274 = vadd.f32 %v1126, %v1273
        %v1275 = vpop.f32.mrb[0].mxu0
        %1276 = vmatprep.mubr.f32.mxu0 0.0
        %1277 = vmatmul.mubr.f32.gmra.mrb[0].mxu0 %v1151
        %v1278 = vpop.f32.mrb[0].mxu0
        %v1279 = vadd.f32 %v1126, %v1278
        %v1280 = vpop.f32.mrb[0].mxu0
        %1281 = vmatprep.mubr.f32.mxu0 0.0
        %1282 = vmatmul.mubr.f32.gmra.mrb[0].mxu0 %v1154
        %v1283 = vpop.f32.mrb[0].mxu0
        %v1284 = vadd.f32 %v1126, %v1283
        %v1285 = vpop.f32.mrb[0].mxu0
        %1286 = vmatprep.mubr.f32.mxu0 0.0
        %1287 = vmatmul.mubr.f32.gmra.mrb[0].mxu0 %v1157
        %v1288 = vpop.f32.mrb[0].mxu0
        %v1289 = vadd.f32 %v1126, %v1288
        %v1290 = vpop.f32.mrb[0].mxu0
        %1291 = vmatprep.mubr.f32.mxu0 0.0
        %1292 = vmatmul.mubr.f32.gmra.mrb[0].mxu0 %v1160
        %v1293 = vpop.f32.mrb[0].mxu0
        %v1294 = vadd.f32 %v1126, %v1293
        %v1295 = vpop.f32.mrb[0].mxu0
        %1296 = vmatprep.mubr.f32.mxu0 0.0
        %1297 = vmatmul.mubr.f32.gmra.mrb[0].mxu0 %v1163
        %v1298 = vpop.f32.mrb[0].mxu0
        %v1299 = vadd.f32 %v1126, %v1298
        %v1300 = vpop.f32.mrb[0].mxu0
        %1301 = vmatprep.mubr.f32.mxu0 0.0
        %1302 = vmatmul.mubr.f32.gmra.mrb[0].mxu0 %v1166
        %v1303 = vpop.f32.mrb[0].mxu0
        %v1304 = vadd.f32 %v1126, %v1303
        %v1305 = vpop.f32.mrb[0].mxu0
        %1306 = vmatprep.mubr.f32.mxu0 0.0
        %1307 = vmatmul.mubr.f32.gmra.mrb[0].mxu0 %v1169
        %v1308 = vpop.f32.mrb[0].mxu0
        %v1309 = vadd.f32 %v1126, %v1308
        %v1310 = vpop.f32.mrb[0].mxu0
        %1311 = vmatprep.mubr.f32.mxu0 0.0
        %1312 = vmatmul.mubr.f32.gmra.mrb[0].mxu0 %v1172
        %v1313 = vpop.f32.mrb[0].mxu0
        %v1314 = vadd.f32 %v1126, %v1313
        %v1315 = vpop.f32.mrb[0].mxu0
        %1316 = vmatprep.mubr.f32.mxu0 0.0
        %1317 = vmatmul.mubr.f32.gmra.mrb[0].mxu0 %v1175
        %v1318 = vpop.f32.mrb[0].mxu0
        %v1319 = vadd.f32 %v1126, %v1318
        %v1320 = vpop.f32.mrb[0].mxu0
        %1321 = vdwg.mxu0
        %vm1322 = vcmp.ge.f32.partialorder %v1244, 0.0
        %vm1323 = vcmp.ge.f32.partialorder %v1249, 0.0
        %vm1324 = vcmp.ge.f32.partialorder %v1254, 0.0
        %vm1325 = vcmp.ge.f32.partialorder %v1259, 0.0
        %vm1326 = vcmp.ge.f32.partialorder %v1264, 0.0
        %vm1327 = vcmp.ge.f32.partialorder %v1269, 0.0
        %vm1328 = vcmp.ge.f32.partialorder %v1274, 0.0
        %vm1329 = vcmp.ge.f32.partialorder %v1279, 0.0
        %vm1330 = vcmp.ge.f32.partialorder %v1284, 0.0
        %vm1331 = vcmp.ge.f32.partialorder %v1289, 0.0
        %vm1332 = vcmp.ge.f32.partialorder %v1294, 0.0
        %vm1333 = vcmp.ge.f32.partialorder %v1299, 0.0
        %vm1334 = vcmp.ge.f32.partialorder %v1304, 0.0
        %vm1335 = vcmp.ge.f32.partialorder %v1309, 0.0
        %vm1336 = vcmp.ge.f32.partialorder %v1314, 0.0
        %vm1337 = vcmp.ge.f32.partialorder %v1319, 0.0
        %v1338 = vmul.f32 %v1244, 0.1
        %v1339 = vmul.f32 %v1249, 0.1
        %v1340 = vmul.f32 %v1254, 0.1
        %v1341 = vmul.f32 %v1259, 0.1
        %v1342 = vmul.f32 %v1264, 0.1
        %v1343 = vmul.f32 %v1269, 0.1
        %v1344 = vmul.f32 %v1274, 0.1
        %v1345 = vmul.f32 %v1279, 0.1
        %v1346 = vmul.f32 %v1284, 0.1
        %v1347 = vmul.f32 %v1289, 0.1
        %v1348 = vmul.f32 %v1294, 0.1
        %v1349 = vmul.f32 %v1299, 0.1
        %v1350 = vmul.f32 %v1304, 0.1
        %v1351 = vmul.f32 %v1309, 0.1
        %v1352 = vmul.f32 %v1314, 0.1
        %v1353 = vmul.f32 %v1319, 0.1
        %v1354 = vsel %vm1322, %v1244, %v1338
        %v1355 = vsel %vm1323, %v1249, %v1339
        %v1356 = vsel %vm1324, %v1254, %v1340
        %v1357 = vsel %vm1325, %v1259, %v1341
        %v1358 = vsel %vm1326, %v1264, %v1342
        %v1359 = vsel %vm1327, %v1269, %v1343
        %v1360 = vsel %vm1328, %v1274, %v1344
        %v1361 = vsel %vm1329, %v1279, %v1345
        %v1362 = vsel %vm1330, %v1284, %v1346
        %v1363 = vsel %vm1331, %v1289, %v1347
        %v1364 = vsel %vm1332, %v1294, %v1348
        %v1365 = vsel %vm1333, %v1299, %v1349
        %v1366 = vsel %vm1334, %v1304, %v1350
        %v1367 = vsel %vm1335, %v1309, %v1351
        %v1368 = vsel %vm1336, %v1314, %v1352
        %v1369 = vsel %vm1337, %v1319, %v1353
        // Predicated region
        $region61: #{tpu_custom_call.1} parent=51 // pred_check
          %p1370 = pneg %p368
        $region62: #{tpu_custom_call.1} parent=51 // pred_check_branch
          %1372 = sbr.rel (%p1370) target = $region64
        $region63: #{tpu_custom_call.1} parent=51 // pred_region
          %v1373 = vld [vmem:[#allocation2] sm:$0x3]
          %v1374 = vmul.f32 %v1354, %v1078
          %v1375 = vmul.f32 %v1355, %v1079
          %v1376 = vmul.f32 %v1356, %v1080
          %v1377 = vmul.f32 %v1357, %v1081
          %v1378 = vmul.f32 %v1358, %v1082
          %v1379 = vmul.f32 %v1359, %v1083
          %v1380 = vmul.f32 %v1360, %v1084
          %v1381 = vmul.f32 %v1361, %v1085
          %v1382 = vmul.f32 %v1362, %v1086
          %v1383 = vmul.f32 %v1363, %v1087
          %v1384 = vmul.f32 %v1364, %v1088
          %v1385 = vmul.f32 %v1365, %v1089
          %v1386 = vmul.f32 %v1366, %v1090
          %v1387 = vmul.f32 %v1367, %v1091
          %v1388 = vmul.f32 %v1368, %v1092
          %v1389 = vmul.f32 %v1369, %v1093
          %v1390 = vadd.f32 %v1374, %v1375
          %v1391 = vadd.f32 %v1390, %v1376
          %v1392 = vadd.f32 %v1391, %v1377
          %v1393 = vadd.f32 %v1392, %v1378
          %v1394 = vadd.f32 %v1393, %v1379
          %v1395 = vadd.f32 %v1394, %v1380
          %v1396 = vadd.f32 %v1395, %v1381
          %v1397 = vadd.f32 %v1396, %v1382
          %v1398 = vadd.f32 %v1397, %v1383
          %v1399 = vadd.f32 %v1398, %v1384
          %v1400 = vadd.f32 %v1399, %v1385
          %v1401 = vadd.f32 %v1400, %v1386
          %v1402 = vadd.f32 %v1401, %v1387
          %v1403 = vadd.f32 %v1402, %v1388
          %v1404 = vadd.f32 %v1403, %v1389
          %v1405 = vrot.slane %v1404, 4
          %v1406 = vadd.f32 %v1404, %v1405
          %v1407 = vrot.slane %v1406, 2
          %v1408 = vadd.f32 %v1406, %v1407
          %v1409 = vrot.slane %v1408, 1
          %v1410 = vadd.f32 %v1408, %v1409
          %v1411 = vmul.f32 %v1374, %v1374
          %v1412 = vmul.f32 %v1375, %v1375
          %v1413 = vmul.f32 %v1376, %v1376
          %v1414 = vmul.f32 %v1377, %v1377
          %v1415 = vmul.f32 %v1378, %v1378
          %v1416 = vmul.f32 %v1379, %v1379
          %v1417 = vmul.f32 %v1380, %v1380
          %v1418 = vmul.f32 %v1381, %v1381
          %v1419 = vmul.f32 %v1382, %v1382
          %v1420 = vmul.f32 %v1383, %v1383
          %v1421 = vmul.f32 %v1384, %v1384
          %v1422 = vmul.f32 %v1385, %v1385
          %v1423 = vmul.f32 %v1386, %v1386
          %v1424 = vmul.f32 %v1387, %v1387
          %v1425 = vmul.f32 %v1388, %v1388
          %v1426 = vmul.f32 %v1389, %v1389
          %v1427 = vadd.f32 %v1411, %v1412
          %v1428 = vadd.f32 %v1427, %v1413
          %v1429 = vadd.f32 %v1428, %v1414
          %v1430 = vadd.f32 %v1429, %v1415
          %v1431 = vadd.f32 %v1430, %v1416
          %v1432 = vadd.f32 %v1431, %v1417
          %v1433 = vadd.f32 %v1432, %v1418
          %v1434 = vadd.f32 %v1433, %v1419
          %v1435 = vadd.f32 %v1434, %v1420
          %v1436 = vadd.f32 %v1435, %v1421
          %v1437 = vadd.f32 %v1436, %v1422
          %v1438 = vadd.f32 %v1437, %v1423
          %v1439 = vadd.f32 %v1438, %v1424
          %v1440 = vadd.f32 %v1439, %v1425
          %v1441 = vadd.f32 %v1440, %v1426
          %v1442 = vrot.slane %v1441, 4
          %v1443 = vadd.f32 %v1441, %v1442
          %v1444 = vrot.slane %v1443, 2
          %v1445 = vadd.f32 %v1443, %v1444
          %v1446 = vrot.slane %v1445, 1
          %v1447 = vadd.f32 %v1445, %v1446
          %vm1448 = vcmask 1040384
          %v1449 = vsel %vm1448, %v1410, %v1447
          %v1450 = vadd.f32 %v1373, %v1449
          %1451 = vst [vmem:[#allocation2] sm:$0x3] %v1450
        $region64: #{tpu_custom_call.1} parent=51 // pred_fallthru
          _
        // Predicated region
        $region65: #{tpu_custom_call.1} parent=51 // pred_check
          %p1452 = pneg %p485
        $region66: #{tpu_custom_call.1} parent=51 // pred_check_branch
          %1454 = sbr.rel (%p1452) target = $region68
        $region67: #{tpu_custom_call.1} parent=51 // pred_region
          %v1455 = vld [vmem:[#allocation5] sm:$0x1]
          %v1457 = vlaneseq
          %v1458 = vshrl.u32 %v1457, 7
          %v1459 = vsub.s32 0, %v1458
          %v1460 = vrot.slane %v1455, %v1459
          %v1462 = vmul.f32 %v1354, %v1460
          %v1463 = vmul.f32 %v1355, %v1460
          %v1464 = vmul.f32 %v1356, %v1460
          %v1465 = vmul.f32 %v1357, %v1460
          %v1466 = vmul.f32 %v1358, %v1460
          %v1467 = vmul.f32 %v1359, %v1460
          %v1468 = vmul.f32 %v1360, %v1460
          %v1469 = vmul.f32 %v1361, %v1460
          %v1470 = vmul.f32 %v1362, %v1460
          %v1471 = vmul.f32 %v1363, %v1460
          %v1472 = vmul.f32 %v1364, %v1460
          %v1473 = vmul.f32 %v1365, %v1460
          %v1474 = vmul.f32 %v1366, %v1460
          %v1475 = vmul.f32 %v1367, %v1460
          %v1476 = vmul.f32 %v1368, %v1460
          %v1477 = vmul.f32 %v1369, %v1460
          %v1478 = vld [vmem:[%s5 + $0x20] sm:$0xff]
          %v1479 = vld [vmem:[%s5 + $0x28] sm:$0xff]
          %v1480 = vld [vmem:[%s5 + $0x30] sm:$0xff]
          %v1481 = vld [vmem:[%s5 + $0x38] sm:$0xff]
          %v1482 = vld [vmem:[%s5 + $0x40] sm:$0xff]
          %v1483 = vld [vmem:[%s5 + $0x48] sm:$0xff]
          %v1484 = vld [vmem:[%s5 + $0x50] sm:$0xff]
          %v1485 = vld [vmem:[%s5 + $0x58] sm:$0xff]
          %v1486 = vld [vmem:[%s5 + $0x60] sm:$0xff]
          %v1487 = vld [vmem:[%s5 + $0x68] sm:$0xff]
          %v1488 = vld [vmem:[%s5 + $0x70] sm:$0xff]
          %v1489 = vld [vmem:[%s5 + $0x78] sm:$0xff]
          %v1490 = vld [vmem:[%s5 + $0x80] sm:$0xff]
          %v1491 = vld [vmem:[%s5 + $0x88] sm:$0xff]
          %v1492 = vld [vmem:[%s5 + $0x90] sm:$0xff]
          %v1493 = vld [vmem:[%s5 + $0x98] sm:$0xff]
          %v1494 = vld [vmem:[#allocation6] sm:$0x1]
          %v1496 = vlaneseq
          %v1497 = vshrl.u32 %v1496, 7
          %v1498 = vsub.s32 0, %v1497
          %v1499 = vrot.slane %v1494, %v1498
          %1501 = vmatprep.subr.mxu0 0.0
          %1502 = vmatpush1.msra.mxu0 %v1478
          %1503 = vmatprep.subr.mxu0 0.0
          %1504 = vmatpush1.msra.mxu0 %v1479
          %1505 = vmatprep.subr.mxu0 0.0
          %1506 = vmatpush1.msra.mxu0 %v1480
          %1507 = vmatprep.subr.mxu0 0.0
          %1508 = vmatpush1.msra.mxu0 %v1481
          %1509 = vmatprep.subr.mxu0 0.0
          %1510 = vmatpush1.msra.mxu0 %v1482
          %1511 = vmatprep.subr.mxu0 0.0
          %1512 = vmatpush1.msra.mxu0 %v1483
          %1513 = vmatprep.subr.mxu0 0.0
          %1514 = vmatpush1.msra.mxu0 %v1484
          %1515 = vmatprep.subr.mxu0 0.0
          %1516 = vmatpush1.msra.mxu0 %v1485
          %1517 = vmatprep.subr.mxu0 0.0
          %1518 = vmatpush1.msra.mxu0 %v1486
          %1519 = vmatprep.subr.mxu0 0.0
          %1520 = vmatpush1.msra.mxu0 %v1487
          %1521 = vmatprep.subr.mxu0 0.0
          %1522 = vmatpush1.msra.mxu0 %v1488
          %1523 = vmatprep.subr.mxu0 0.0
          %1524 = vmatpush1.msra.mxu0 %v1489
          %1525 = vmatprep.subr.mxu0 0.0
          %1526 = vmatpush1.msra.mxu0 %v1490
          %1527 = vmatprep.subr.mxu0 0.0
          %1528 = vmatpush1.msra.mxu0 %v1491
          %1529 = vmatprep.subr.mxu0 0.0
          %1530 = vmatpush1.msra.mxu0 %v1492
          %1531 = vmatprep.subr.mxu0 0.0
          %1532 = vmatpush1.msra.mxu0 %v1493
          %1533 = vmatprep.subr.mxu0 0.0
          %1534 = vmatpush1.msra.mxu0 0.0
          %1535 = vmatprep.subr.mxu0 0.0
          %1536 = vmatpush1.msra.mxu0 0.0
          %1537 = vmatprep.subr.mxu0 0.0
          %1538 = vmatpush1.msra.mxu0 0.0
          %1539 = vmatprep.subr.mxu0 0.0
          %1540 = vmatpush1.msra.mxu0 0.0
          %1541 = vmatprep.subr.mxu0 0.0
          %1542 = vmatpush1.msra.mxu0 0.0
          %1543 = vmatprep.subr.mxu0 0.0
          %1544 = vmatpush1.msra.mxu0 0.0
          %1545 = vmatprep.subr.mxu0 0.0
          %1546 = vmatpush1.msra.mxu0 0.0
          %1547 = vmatprep.subr.mxu0 0.0
          %1548 = vmatpush1.msra.mxu0 0.0
          %1549 = vmatprep.subr.mxu0 0.0
          %1550 = vmatpush1.msra.mxu0 0.0
          %1551 = vmatprep.subr.mxu0 0.0
          %1552 = vmatpush1.msra.mxu0 0.0
          %1553 = vmatprep.subr.mxu0 0.0
          %1554 = vmatpush1.msra.mxu0 0.0
          %1555 = vmatprep.subr.mxu0 0.0
          %1556 = vmatpush1.msra.mxu0 0.0
          %1557 = vmatprep.subr.mxu0 0.0
          %1558 = vmatpush1.msra.mxu0 0.0
          %1559 = vmatprep.subr.mxu0 0.0
          %1560 = vmatpush1.msra.mxu0 0.0
          %1561 = vmatprep.subr.mxu0 0.0
          %1562 = vmatpush1.msra.mxu0 0.0
          %1563 = vmatprep.subr.mxu0 0.0
          %1564 = vmatpush1.msra.mxu0 0.0
          %1565 = vmatprep.mubr.f32.mxu0 0.0
          %1566 = vmatmul.mubr.f32.gmra.mrb[0].mxu0 %v1462
          %v1567 = vpop.f32.mrb[0].mxu0
          %v1568 = vadd.f32 %v1499, %v1567
          %v1569 = vpop.f32.mrb[0].mxu0
          %1570 = vmatprep.mubr.f32.mxu0 0.0
          %1571 = vmatmul.mubr.f32.gmra.mrb[0].mxu0 %v1463
          %v1572 = vpop.f32.mrb[0].mxu0
          %v1573 = vadd.f32 %v1499, %v1572
          %v1574 = vpop.f32.mrb[0].mxu0
          %1575 = vmatprep.mubr.f32.mxu0 0.0
          %1576 = vmatmul.mubr.f32.gmra.mrb[0].mxu0 %v1464
          %v1577 = vpop.f32.mrb[0].mxu0
          %v1578 = vadd.f32 %v1499, %v1577
          %v1579 = vpop.f32.mrb[0].mxu0
          %1580 = vmatprep.mubr.f32.mxu0 0.0
          %1581 = vmatmul.mubr.f32.gmra.mrb[0].mxu0 %v1465
          %v1582 = vpop.f32.mrb[0].mxu0
          %v1583 = vadd.f32 %v1499, %v1582
          %v1584 = vpop.f32.mrb[0].mxu0
          %1585 = vmatprep.mubr.f32.mxu0 0.0
          %1586 = vmatmul.mubr.f32.gmra.mrb[0].mxu0 %v1466
          %v1587 = vpop.f32.mrb[0].mxu0
          %v1588 = vadd.f32 %v1499, %v1587
          %v1589 = vpop.f32.mrb[0].mxu0
          %1590 = vmatprep.mubr.f32.mxu0 0.0
          %1591 = vmatmul.mubr.f32.gmra.mrb[0].mxu0 %v1467
          %v1592 = vpop.f32.mrb[0].mxu0
          %v1593 = vadd.f32 %v1499, %v1592
          %v1594 = vpop.f32.mrb[0].mxu0
          %1595 = vmatprep.mubr.f32.mxu0 0.0
          %1596 = vmatmul.mubr.f32.gmra.mrb[0].mxu0 %v1468
          %v1597 = vpop.f32.mrb[0].mxu0
          %v1598 = vadd.f32 %v1499, %v1597
          %v1599 = vpop.f32.mrb[0].mxu0
          %1600 = vmatprep.mubr.f32.mxu0 0.0
          %1601 = vmatmul.mubr.f32.gmra.mrb[0].mxu0 %v1469
          %v1602 = vpop.f32.mrb[0].mxu0
          %v1603 = vadd.f32 %v1499, %v1602
          %v1604 = vpop.f32.mrb[0].mxu0
          %1605 = vmatprep.mubr.f32.mxu0 0.0
          %1606 = vmatmul.mubr.f32.gmra.mrb[0].mxu0 %v1470
          %v1607 = vpop.f32.mrb[0].mxu0
          %v1608 = vadd.f32 %v1499, %v1607
          %v1609 = vpop.f32.mrb[0].mxu0
          %1610 = vmatprep.mubr.f32.mxu0 0.0
          %1611 = vmatmul.mubr.f32.gmra.mrb[0].mxu0 %v1471
          %v1612 = vpop.f32.mrb[0].mxu0
          %v1613 = vadd.f32 %v1499, %v1612
          %v1614 = vpop.f32.mrb[0].mxu0
          %1615 = vmatprep.mubr.f32.mxu0 0.0
          %1616 = vmatmul.mubr.f32.gmra.mrb[0].mxu0 %v1472
          %v1617 = vpop.f32.mrb[0].mxu0
          %v1618 = vadd.f32 %v1499, %v1617
          %v1619 = vpop.f32.mrb[0].mxu0
          %1620 = vmatprep.mubr.f32.mxu0 0.0
          %1621 = vmatmul.mubr.f32.gmra.mrb[0].mxu0 %v1473
          %v1622 = vpop.f32.mrb[0].mxu0
          %v1623 = vadd.f32 %v1499, %v1622
          %v1624 = vpop.f32.mrb[0].mxu0
          %1625 = vmatprep.mubr.f32.mxu0 0.0
          %1626 = vmatmul.mubr.f32.gmra.mrb[0].mxu0 %v1474
          %v1627 = vpop.f32.mrb[0].mxu0
          %v1628 = vadd.f32 %v1499, %v1627
          %v1629 = vpop.f32.mrb[0].mxu0
          %1630 = vmatprep.mubr.f32.mxu0 0.0
          %1631 = vmatmul.mubr.f32.gmra.mrb[0].mxu0 %v1475
          %v1632 = vpop.f32.mrb[0].mxu0
          %v1633 = vadd.f32 %v1499, %v1632
          %v1634 = vpop.f32.mrb[0].mxu0
          %1635 = vmatprep.mubr.f32.mxu0 0.0
          %1636 = vmatmul.mubr.f32.gmra.mrb[0].mxu0 %v1476
          %v1637 = vpop.f32.mrb[0].mxu0
          %v1638 = vadd.f32 %v1499, %v1637
          %v1639 = vpop.f32.mrb[0].mxu0
          %1640 = vmatprep.mubr.f32.mxu0 0.0
          %1641 = vmatmul.mubr.f32.gmra.mrb[0].mxu0 %v1477
          %v1642 = vpop.f32.mrb[0].mxu0
          %v1643 = vadd.f32 %v1499, %v1642
          %v1644 = vpop.f32.mrb[0].mxu0
          %1645 = vdwg.mxu0
          %vm1646 = vcmp.ge.f32.partialorder %v1568, 0.0
          %vm1647 = vcmp.ge.f32.partialorder %v1573, 0.0
          %vm1648 = vcmp.ge.f32.partialorder %v1578, 0.0
          %vm1649 = vcmp.ge.f32.partialorder %v1583, 0.0
          %vm1650 = vcmp.ge.f32.partialorder %v1588, 0.0
          %vm1651 = vcmp.ge.f32.partialorder %v1593, 0.0
          %vm1652 = vcmp.ge.f32.partialorder %v1598, 0.0
          %vm1653 = vcmp.ge.f32.partialorder %v1603, 0.0
          %vm1654 = vcmp.ge.f32.partialorder %v1608, 0.0
          %vm1655 = vcmp.ge.f32.partialorder %v1613, 0.0
          %vm1656 = vcmp.ge.f32.partialorder %v1618, 0.0
          %vm1657 = vcmp.ge.f32.partialorder %v1623, 0.0
          %vm1658 = vcmp.ge.f32.partialorder %v1628, 0.0
          %vm1659 = vcmp.ge.f32.partialorder %v1633, 0.0
          %vm1660 = vcmp.ge.f32.partialorder %v1638, 0.0
          %vm1661 = vcmp.ge.f32.partialorder %v1643, 0.0
          %v1662 = vmul.f32 %v1568, 0.1
          %v1663 = vmul.f32 %v1573, 0.1
          %v1664 = vmul.f32 %v1578, 0.1
          %v1665 = vmul.f32 %v1583, 0.1
          %v1666 = vmul.f32 %v1588, 0.1
          %v1667 = vmul.f32 %v1593, 0.1
          %v1668 = vmul.f32 %v1598, 0.1
          %v1669 = vmul.f32 %v1603, 0.1
          %v1670 = vmul.f32 %v1608, 0.1
          %v1671 = vmul.f32 %v1613, 0.1
          %v1672 = vmul.f32 %v1618, 0.1
          %v1673 = vmul.f32 %v1623, 0.1
          %v1674 = vmul.f32 %v1628, 0.1
          %v1675 = vmul.f32 %v1633, 0.1
          %v1676 = vmul.f32 %v1638, 0.1
          %v1677 = vmul.f32 %v1643, 0.1
          %v1678 = vsel %vm1646, %v1568, %v1662
          %v1679 = vsel %vm1647, %v1573, %v1663
          %v1680 = vsel %vm1648, %v1578, %v1664
          %v1681 = vsel %vm1649, %v1583, %v1665
          %v1682 = vsel %vm1650, %v1588, %v1666
          %v1683 = vsel %vm1651, %v1593, %v1667
          %v1684 = vsel %vm1652, %v1598, %v1668
          %v1685 = vsel %vm1653, %v1603, %v1669
          %v1686 = vsel %vm1654, %v1608, %v1670
          %v1687 = vsel %vm1655, %v1613, %v1671
          %v1688 = vsel %vm1656, %v1618, %v1672
          %v1689 = vsel %vm1657, %v1623, %v1673
          %v1690 = vsel %vm1658, %v1628, %v1674
          %v1691 = vsel %vm1659, %v1633, %v1675
          %v1692 = vsel %vm1660, %v1638, %v1676
          %v1693 = vsel %vm1661, %v1643, %v1677
          %v1694 = vld [vmem:[#allocation9] sm:$0x3]
          %v1695 = vmul.f32 %v1678, %v1078
          %v1696 = vmul.f32 %v1679, %v1079
          %v1697 = vmul.f32 %v1680, %v1080
          %v1698 = vmul.f32 %v1681, %v1081
          %v1699 = vmul.f32 %v1682, %v1082
          %v1700 = vmul.f32 %v1683, %v1083
          %v1701 = vmul.f32 %v1684, %v1084
          %v1702 = vmul.f32 %v1685, %v1085
          %v1703 = vmul.f32 %v1686, %v1086
          %v1704 = vmul.f32 %v1687, %v1087
          %v1705 = vmul.f32 %v1688, %v1088
          %v1706 = vmul.f32 %v1689, %v1089
          %v1707 = vmul.f32 %v1690, %v1090
          %v1708 = vmul.f32 %v1691, %v1091
          %v1709 = vmul.f32 %v1692, %v1092
          %v1710 = vmul.f32 %v1693, %v1093
          %v1711 = vadd.f32 %v1695, %v1696
          %v1712 = vadd.f32 %v1711, %v1697
          %v1713 = vadd.f32 %v1712, %v1698
          %v1714 = vadd.f32 %v1713, %v1699
          %v1715 = vadd.f32 %v1714, %v1700
          %v1716 = vadd.f32 %v1715, %v1701
          %v1717 = vadd.f32 %v1716, %v1702
          %v1718 = vadd.f32 %v1717, %v1703
          %v1719 = vadd.f32 %v1718, %v1704
          %v1720 = vadd.f32 %v1719, %v1705
          %v1721 = vadd.f32 %v1720, %v1706
          %v1722 = vadd.f32 %v1721, %v1707
          %v1723 = vadd.f32 %v1722, %v1708
          %v1724 = vadd.f32 %v1723, %v1709
          %v1725 = vadd.f32 %v1724, %v1710
          %v1726 = vrot.slane %v1725, 4
          %v1727 = vadd.f32 %v1725, %v1726
          %v1728 = vrot.slane %v1727, 2
          %v1729 = vadd.f32 %v1727, %v1728
          %v1730 = vrot.slane %v1729, 1
          %v1731 = vadd.f32 %v1729, %v1730
          %v1732 = vmul.f32 %v1695, %v1695
          %v1733 = vmul.f32 %v1696, %v1696
          %v1734 = vmul.f32 %v1697, %v1697
          %v1735 = vmul.f32 %v1698, %v1698
          %v1736 = vmul.f32 %v1699, %v1699
          %v1737 = vmul.f32 %v1700, %v1700
          %v1738 = vmul.f32 %v1701, %v1701
          %v1739 = vmul.f32 %v1702, %v1702
          %v1740 = vmul.f32 %v1703, %v1703
          %v1741 = vmul.f32 %v1704, %v1704
          %v1742 = vmul.f32 %v1705, %v1705
          %v1743 = vmul.f32 %v1706, %v1706
          %v1744 = vmul.f32 %v1707, %v1707
          %v1745 = vmul.f32 %v1708, %v1708
          %v1746 = vmul.f32 %v1709, %v1709
          %v1747 = vmul.f32 %v1710, %v1710
          %v1748 = vadd.f32 %v1732, %v1733
          %v1749 = vadd.f32 %v1748, %v1734
          %v1750 = vadd.f32 %v1749, %v1735
          %v1751 = vadd.f32 %v1750, %v1736
          %v1752 = vadd.f32 %v1751, %v1737
          %v1753 = vadd.f32 %v1752, %v1738
          %v1754 = vadd.f32 %v1753, %v1739
          %v1755 = vadd.f32 %v1754, %v1740
          %v1756 = vadd.f32 %v1755, %v1741
          %v1757 = vadd.f32 %v1756, %v1742
          %v1758 = vadd.f32 %v1757, %v1743
          %v1759 = vadd.f32 %v1758, %v1744
          %v1760 = vadd.f32 %v1759, %v1745
          %v1761 = vadd.f32 %v1760, %v1746
          %v1762 = vadd.f32 %v1761, %v1747
          %v1763 = vrot.slane %v1762, 4
          %v1764 = vadd.f32 %v1762, %v1763
          %v1765 = vrot.slane %v1764, 2
          %v1766 = vadd.f32 %v1764, %v1765
          %v1767 = vrot.slane %v1766, 1
          %v1768 = vadd.f32 %v1766, %v1767
          %vm1769 = vcmask 1040384
          %v1770 = vsel %vm1769, %v1731, %v1768
          %v1771 = vadd.f32 %v1694, %v1770
          %1772 = vst [vmem:[#allocation9] sm:$0x3] %v1771
          %vm1773 = vcmp.eq.s32.totalorder %v615, 32
          %v1774 = vsel %vm1773, 1.0, %v1678
          %v1775 = vsel %vm1773, 1.0, %v1679
          %v1776 = vsel %vm1773, 1.0, %v1680
          %v1777 = vsel %vm1773, 1.0, %v1681
          %v1778 = vsel %vm1773, 1.0, %v1682
          %v1779 = vsel %vm1773, 1.0, %v1683
          %v1780 = vsel %vm1773, 1.0, %v1684
          %v1781 = vsel %vm1773, 1.0, %v1685
          %v1782 = vsel %vm1773, 1.0, %v1686
          %v1783 = vsel %vm1773, 1.0, %v1687
          %v1784 = vsel %vm1773, 1.0, %v1688
          %v1785 = vsel %vm1773, 1.0, %v1689
          %v1786 = vsel %vm1773, 1.0, %v1690
          %v1787 = vsel %vm1773, 1.0, %v1691
          %v1788 = vsel %vm1773, 1.0, %v1692
          %v1789 = vsel %vm1773, 1.0, %v1693
          %v1790 = vld [vmem:[%s367] sm:$0x1]
          %v1791 = vlaneseq
          %v1792 = vshrl.u32 %v1791, 7
          %v1793 = vsub.s32 0, %v1792
          %v1794 = vrot.slane %v1790, %v1793
          %vm1795 = vcmp.eq.s32.totalorder %v1013, %v1794
          %vm1796 = vcmp.eq.s32.totalorder %v1014, %v1794
          %vm1797 = vcmp.eq.s32.totalorder %v1015, %v1794
          %vm1798 = vcmp.eq.s32.totalorder %v1016, %v1794
          %vm1799 = vcmp.eq.s32.totalorder %v1017, %v1794
          %vm1800 = vcmp.eq.s32.totalorder %v1018, %v1794
          %vm1801 = vcmp.eq.s32.totalorder %v1019, %v1794
          %vm1802 = vcmp.eq.s32.totalorder %v1020, %v1794
          %v1803 = vsel %vm1795, 1, 0
          %v1804 = vsel %vm1796, 1, 0
          %v1805 = vsel %vm1797, 1, 0
          %v1806 = vsel %vm1798, 1, 0
          %v1807 = vsel %vm1799, 1, 0
          %v1808 = vsel %vm1800, 1, 0
          %v1809 = vsel %vm1801, 1, 0
          %v1810 = vsel %vm1802, 1, 0
          %v1811 = vcvt.s32.f32 %v1803
          %v1812 = vcvt.s32.f32 %v1804
          %v1813 = vcvt.s32.f32 %v1805
          %v1814 = vcvt.s32.f32 %v1806
          %v1815 = vcvt.s32.f32 %v1807
          %v1816 = vcvt.s32.f32 %v1808
          %v1817 = vcvt.s32.f32 %v1809
          %v1818 = vcvt.s32.f32 %v1810
          %v1819 = vld [vmem:[#allocation7] sm:$0xff]
          %v1820 = vld [vmem:[#allocation7 + $0x8] sm:$0xff]
          %v1821 = vld [vmem:[#allocation7 + $0x10] sm:$0xff]
          %v1822 = vld [vmem:[#allocation7 + $0x18] sm:$0xff]
          %v1823 = vld [vmem:[#allocation7 + $0x20] sm:$0xff]
          %v1824 = vld [vmem:[#allocation7 + $0x28] sm:$0xff]
          %v1825 = vld [vmem:[#allocation7 + $0x30] sm:$0xff]
          %v1826 = vld [vmem:[#allocation7 + $0x38] sm:$0xff]
          %1827 = vmatprep.subr.mxu0 0.0
          %1828 = vmatpush1.msra.mxu0 %v1774
          %1829 = vmatprep.subr.mxu0 0.0
          %1830 = vmatpush1.msra.mxu0 %v1775
          %1831 = vmatprep.subr.mxu0 0.0
          %1832 = vmatpush1.msra.mxu0 %v1776
          %1833 = vmatprep.subr.mxu0 0.0
          %1834 = vmatpush1.msra.mxu0 %v1777
          %1835 = vmatprep.subr.mxu0 0.0
          %1836 = vmatpush1.msra.mxu0 %v1778
          %1837 = vmatprep.subr.mxu0 0.0
          %1838 = vmatpush1.msra.mxu0 %v1779
          %1839 = vmatprep.subr.mxu0 0.0
          %1840 = vmatpush1.msra.mxu0 %v1780
          %1841 = vmatprep.subr.mxu0 0.0
          %1842 = vmatpush1.msra.mxu0 %v1781
          %1843 = vmatprep.subr.mxu0 0.0
          %1844 = vmatpush1.msra.mxu0 %v1782
          %1845 = vmatprep.subr.mxu0 0.0
          %1846 = vmatpush1.msra.mxu0 %v1783
          %1847 = vmatprep.subr.mxu0 0.0
          %1848 = vmatpush1.msra.mxu0 %v1784
          %1849 = vmatprep.subr.mxu0 0.0
          %1850 = vmatpush1.msra.mxu0 %v1785
          %1851 = vmatprep.subr.mxu0 0.0
          %1852 = vmatpush1.msra.mxu0 %v1786
          %1853 = vmatprep.subr.mxu0 0.0
          %1854 = vmatpush1.msra.mxu0 %v1787
          %1855 = vmatprep.subr.mxu0 0.0
          %1856 = vmatpush1.msra.mxu0 %v1788
          %1857 = vmatprep.subr.mxu0 0.0
          %1858 = vmatpush1.msra.mxu0 %v1789
          %1859 = vmatprep.subr.mxu0 0.0
          %1860 = vmatpush1.msra.mxu0 0.0
          %1861 = vmatprep.subr.mxu0 0.0
          %1862 = vmatpush1.msra.mxu0 0.0
          %1863 = vmatprep.subr.mxu0 0.0
          %1864 = vmatpush1.msra.mxu0 0.0
          %1865 = vmatprep.subr.mxu0 0.0
          %1866 = vmatpush1.msra.mxu0 0.0
          %1867 = vmatprep.subr.mxu0 0.0
          %1868 = vmatpush1.msra.mxu0 0.0
          %1869 = vmatprep.subr.mxu0 0.0
          %1870 = vmatpush1.msra.mxu0 0.0
          %1871 = vmatprep.subr.mxu0 0.0
          %1872 = vmatpush1.msra.mxu0 0.0
          %1873 = vmatprep.subr.mxu0 0.0
          %1874 = vmatpush1.msra.mxu0 0.0
          %1875 = vmatprep.subr.mxu0 0.0
          %1876 = vmatpush1.msra.mxu0 0.0
          %1877 = vmatprep.subr.mxu0 0.0
          %1878 = vmatpush1.msra.mxu0 0.0
          %1879 = vmatprep.subr.mxu0 0.0
          %1880 = vmatpush1.msra.mxu0 0.0
          %1881 = vmatprep.subr.mxu0 0.0
          %1882 = vmatpush1.msra.mxu0 0.0
          %1883 = vmatprep.subr.mxu0 0.0
          %1884 = vmatpush1.msra.mxu0 0.0
          %1885 = vmatprep.subr.mxu0 0.0
          %1886 = vmatpush1.msra.mxu0 0.0
          %1887 = vmatprep.subr.mxu0 0.0
          %1888 = vmatpush1.msra.mxu0 0.0
          %1889 = vmatprep.subr.mxu0 0.0
          %1890 = vmatpush1.msra.mxu0 0.0
          %1891 = vmatprep.mubr.f32.mxu0 0.0
          %1892 = vmatmul.mubr.f32.gmra.mrb[0].mxu0 %v1811
          %v1893 = vpop.f32.mrb[0].mxu0
          %v1894 = vadd.f32 0.0, %v1893
          %v1895 = vpop.f32.mrb[0].mxu0
          %1896 = vmatprep.mubr.f32.mxu0 0.0
          %1897 = vmatmul.mubr.f32.gmra.mrb[0].mxu0 %v1812
          %v1898 = vpop.f32.mrb[0].mxu0
          %v1899 = vadd.f32 0.0, %v1898
          %v1900 = vpop.f32.mrb[0].mxu0
          %1901 = vmatprep.mubr.f32.mxu0 0.0
          %1902 = vmatmul.mubr.f32.gmra.mrb[0].mxu0 %v1813
          %v1903 = vpop.f32.mrb[0].mxu0
          %v1904 = vadd.f32 0.0, %v1903
          %v1905 = vpop.f32.mrb[0].mxu0
          %1906 = vmatprep.mubr.f32.mxu0 0.0
          %1907 = vmatmul.mubr.f32.gmra.mrb[0].mxu0 %v1814
          %v1908 = vpop.f32.mrb[0].mxu0
          %v1909 = vadd.f32 0.0, %v1908
          %v1910 = vpop.f32.mrb[0].mxu0
          %1911 = vmatprep.mubr.f32.mxu0 0.0
          %1912 = vmatmul.mubr.f32.gmra.mrb[0].mxu0 %v1815
          %v1913 = vpop.f32.mrb[0].mxu0
          %v1914 = vadd.f32 0.0, %v1913
          %v1915 = vpop.f32.mrb[0].mxu0
          %1916 = vmatprep.mubr.f32.mxu0 0.0
          %1917 = vmatmul.mubr.f32.gmra.mrb[0].mxu0 %v1816
          %v1918 = vpop.f32.mrb[0].mxu0
          %v1919 = vadd.f32 0.0, %v1918
          %v1920 = vpop.f32.mrb[0].mxu0
          %1921 = vmatprep.mubr.f32.mxu0 0.0
          %1922 = vmatmul.mubr.f32.gmra.mrb[0].mxu0 %v1817
          %v1923 = vpop.f32.mrb[0].mxu0
          %v1924 = vadd.f32 0.0, %v1923
          %v1925 = vpop.f32.mrb[0].mxu0
          %1926 = vmatprep.mubr.f32.mxu0 0.0
          %1927 = vmatmul.mubr.f32.gmra.mrb[0].mxu0 %v1818
          %v1928 = vpop.f32.mrb[0].mxu0
          %v1929 = vadd.f32 0.0, %v1928
          %v1930 = vpop.f32.mrb[0].mxu0
          %1931 = vdwg.mxu0
          %v1932 = vadd.f32 %v1819, %v1894
          %v1933 = vadd.f32 %v1820, %v1899
          %v1934 = vadd.f32 %v1821, %v1904
          %v1935 = vadd.f32 %v1822, %v1909
          %v1936 = vadd.f32 %v1823, %v1914
          %v1937 = vadd.f32 %v1824, %v1919
          %v1938 = vadd.f32 %v1825, %v1924
          %v1939 = vadd.f32 %v1826, %v1929
          %1940 = vst [vmem:[#allocation7] sm:$0xff] %v1932
          %1941 = vst [vmem:[#allocation7 + $0x8] sm:$0xff] %v1933
          %1942 = vst [vmem:[#allocation7 + $0x10] sm:$0xff] %v1934
          %1943 = vst [vmem:[#allocation7 + $0x18] sm:$0xff] %v1935
          %1944 = vst [vmem:[#allocation7 + $0x20] sm:$0xff] %v1936
          %1945 = vst [vmem:[#allocation7 + $0x28] sm:$0xff] %v1937
          %1946 = vst [vmem:[#allocation7 + $0x30] sm:$0xff] %v1938
          %1947 = vst [vmem:[#allocation7 + $0x38] sm:$0xff] %v1939
        $region68: #{tpu_custom_call.1} parent=51 // pred_fallthru
          _
        // Predicated region
        $region69: #{tpu_custom_call.1} parent=51 // pred_check
          %p1948 = pneg %p231
        $region70: #{tpu_custom_call.1} parent=51 // pred_check_branch
          %1950 = sbr.rel (%p1948) target = $region72
        $region71: #{tpu_custom_call.1} parent=51 // pred_region
          %s1952 = ssub.s32 1024, 1024
          %1953 = vsyncadd [#allocation8], %s1952
          %s1954 = sshll.u32 [#allocation7], 4
          %s1955 = int_to_ptr.vmem [resolvable:$true] %s1954
          %1960 = dma.vmem_to_hbm [thread:$0]  %s1955, 1024, %s8, [#allocation8], 128, 128, 8
        $region72: #{tpu_custom_call.1} parent=51 // pred_fallthru
          _
        // Predicated region
        $region73: #{tpu_custom_call.1} parent=51 // pred_check
          %p1961 = pneg %p252
        $region74: #{tpu_custom_call.1} parent=51 // pred_check_branch
          %1963 = sbr.rel (%p1961) target = $region76
        $region75: #{tpu_custom_call.1} parent=51 // pred_region
          %s1965 = ssub.s32 32, 32
          %1966 = vsyncadd [#allocation10], %s1965
          %s1968 = sshll.u32 [#allocation9], 4
          %s1969 = int_to_ptr.vmem [resolvable:$true] %s1968
          %1971 = dma.vmem_to_hbm [thread:$0]  %s1969, 32, %s9, [#allocation10]
        $region76: #{tpu_custom_call.1} parent=51 // pred_fallthru
          _
        // Predicated region
        $region77: #{tpu_custom_call.1} parent=51 // pred_check
          %p1972 = pneg %p231
        $region78: #{tpu_custom_call.1} parent=51 // pred_check_branch
          %1974 = sbr.rel (%p1972) target = $region80
        $region79: #{tpu_custom_call.1} parent=51 // pred_region
          %1975 = dma.done [#allocation8], 1024
        $region80: #{tpu_custom_call.1} parent=51 // pred_fallthru
          _
        // Predicated region
        $region81: #{tpu_custom_call.1} parent=51 // pred_check
          %p1976 = pneg %p252
        $region82: #{tpu_custom_call.1} parent=51 // pred_check_branch
          %1978 = sbr.rel (%p1976) target = $region84
        $region83: #{tpu_custom_call.1} parent=51 // pred_region
          %1979 = dma.done [#allocation10], 32
        $region84: #{tpu_custom_call.1} parent=51 // pred_fallthru
          _
      $region52: #{tpu_custom_call.1} parent=5 // pred_fallthru
        _
      %p1980 = scmp.le.s32.totalorder 2, %s18
      // Predicated region
      $region85: #{tpu_custom_call.1} parent=5 // pred_check
        %p1981 = pneg %p1980
      $region86: #{tpu_custom_call.1} parent=5 // pred_check_branch
        %1983 = sbr.rel (%p1981) target = $region88
      $region87: #{tpu_custom_call.1} parent=5 // pred_region
        %s1984 = ssub.s32 %s18, 2
      $region88: #{tpu_custom_call.1} parent=5 // pred_fallthru
        _
    $region6: #{tpu_custom_call.1} parent=1 // loop_footer
      %s22 = sadd.s32 1, %s18
    $region7: #{tpu_custom_call.1} parent=1 // loop_footer_branch
      %17 = sbr.rel target = $region3
    $region8: #{tpu_custom_call.1} parent=1 // loop_exit
      _
    %1985 = vsyncpa [#allocation8], 1
    %s1986 = scalar_lea.sflag [#allocation8], 1
    %1987 = vsyncpa %s1986, 1
    %1988 = vsyncpa [#allocation10], 1

</llo_original>
